<compile_context>
chip_gen: v7x
topology: tpu7x:2x2x1
jax: 0.10.0
libtpu: 0.0.40
codegen_flags: <defaults>
</compile_context>

<pallas_src>
import functools

import jax
import jax.numpy as jnp
from jax.experimental import pallas as pl
from jax.experimental.pallas import tpu as pltpu


PAD = 128      # lane width; hidden feature dims zero-padded to this
OUT_PAD = 8    # padded output width (real out_dim <= 8); lane-narrow store


def _tensorcores_per_chip():
    """Best-effort TensorCore count per chip (2 on v7x, else 1)."""
    try:
        kind = jax.devices()[0].device_kind.lower()
    except Exception:
        return 1
    return 2 if "7" in kind else 1


# -----------------------------------------------------------------------------
# Kernel: full padded MLP for one batch tile.
#   x_ref, y_ref : (tm, 1)  f32      spatial coordinates
#   w_ref        : (L, PAD, PAD)     zero-padded stacked weights (f32 or bf16)
#   b_ref        : (L, 1, PAD) f32   zero-padded stacked biases
#   out_ref      : (tm, OUT_PAD) f32 lane-narrow output (cols >= out_dim zero)
# -----------------------------------------------------------------------------
def pinn_mlp_kernel(x_ref, y_ref, w_ref, b_ref, out_ref, *, n_layers):
    x = x_ref[...]                       # (tm, 1)
    y = y_ref[...]                       # (tm, 1)

    # Layer 0 on the VPU: a K=2 matmul would burn a full MXU pass doing ~1.5%
    # useful work. Only the two live weight rows are loaded.
    z = x * w_ref[0, 0:1, :] + y * w_ref[0, 1:2, :] + b_ref[0]
    a = jnp.tanh(z) if n_layers > 1 else z

    # Hidden + output layers on the MXU, f32 accumulation. If the weight stack
    # is packed as bf16, activations are cast to match the MXU operand dtype.
    for i in range(1, n_layers):
        w = w_ref[i]                     # (PAD, PAD)
        z = jnp.dot(a.astype(w.dtype), w,
                    preferred_element_type=jnp.float32) + b_ref[i]
        a = jnp.tanh(z) if i < n_layers - 1 else z

    # Lane-narrow store: only the padded output columns go back to HBM.
    out_ref[...] = a[:, : out_ref.shape[-1]].astype(out_ref.dtype)


# -----------------------------------------------------------------------------
# Parameter packing (done once): zero-pad every layer to (PAD, PAD) / (1, PAD)
# and stack, so the kernel sees exactly two resident parameter inputs.
# dtype=jnp.bfloat16 enables bf16 MXU operands (validate PINN derivative
# accuracy before using for training).
# -----------------------------------------------------------------------------
def pack_params(params, pad=PAD, dtype=jnp.float32):
    n_layers = len(params)
    w_stack = jnp.zeros((n_layers, pad, pad), dtype)
    b_stack = jnp.zeros((n_layers, 1, pad), jnp.float32)
    for i, (w, b) in enumerate(params):
        w_stack = w_stack.at[i, : w.shape[0], : w.shape[1]].set(w.astype(dtype))
        b_stack = b_stack.at[i, 0, : b.shape[0]].set(b.astype(jnp.float32))
    layer_dims = [params[0][0].shape[0]] + [w.shape[1] for w, _ in params]
    return w_stack, b_stack, layer_dims


# -----------------------------------------------------------------------------
# Wrapper: batch padding + pallas_call.
# -----------------------------------------------------------------------------
def pinn_forward(x, y, w_stack, b_stack, layer_dims, *, tm=2048):
    n = x.shape[0]
    out_dim = layer_dims[-1]
    n_layers = w_stack.shape[0]
    assert layer_dims[0] == 2, "layer-0 VPU shortcut assumes in_dim == 2"
    assert out_dim <= OUT_PAD

    x = x.astype(jnp.float32).reshape(n, 1)
    y = y.astype(jnp.float32).reshape(n, 1)

    # Batch tile: as large as requested. Only 2-TC chips (v7x) benefit from
    # splitting the batch across grid steps; on 1-TC chips the grid is a
    # serial loop, so a single big step minimizes fixed per-step overhead.
    n_tc = _tensorcores_per_chip()
    rows_per_core = -(-n // n_tc)
    tm_eff = max(8, min(tm, -(-rows_per_core // 8) * 8))   # multiple of 8
    n_pad = -(-n // tm_eff) * tm_eff
    if n_pad != n:
        x = jnp.pad(x, ((0, n_pad - n), (0, 0)))
        y = jnp.pad(y, ((0, n_pad - n), (0, 0)))

    # Advisory cost estimate reflecting the actual (padded) HBM traffic.
    w_itemsize = int(jnp.dtype(w_stack.dtype).itemsize)
    bytes_accessed = int(
        4 * 2 * n_pad                                   # x, y read
        + 4 * n_pad * OUT_PAD                           # output written
        + w_itemsize * w_stack.size + 4 * b_stack.size  # params (fetched once)
    )
    flops = int(2 * n_pad * PAD * PAD * (n_layers - 1)   # MXU layers (padded)
                + 4 * n_pad * PAD)                       # layer-0 VPU
    transcendentals = int(n_pad * PAD * (n_layers - 1))  # tanh

    kernel = functools.partial(pinn_mlp_kernel, n_layers=n_layers)

    out = pl.pallas_call(
        kernel,
        out_shape=jax.ShapeDtypeStruct((n_pad, OUT_PAD), jnp.float32),
        grid=(n_pad // tm_eff,),
        in_specs=[
            pl.BlockSpec((tm_eff, 1), lambda i: (i, 0)),          # x
            pl.BlockSpec((tm_eff, 1), lambda i: (i, 0)),          # y
            pl.BlockSpec(w_stack.shape, lambda i: (0, 0, 0)),     # packed W
            pl.BlockSpec(b_stack.shape, lambda i: (0, 0, 0)),     # packed b
        ],
        out_specs=pl.BlockSpec((tm_eff, OUT_PAD), lambda i: (i, 0)),
        compiler_params=pltpu.CompilerParams(
            dimension_semantics=("parallel",),
        ),
        cost_estimate=pl.CostEstimate(
            flops=flops,
            transcendentals=transcendentals,
            bytes_accessed=bytes_accessed,
        ),
    )(x, y, w_stack, b_stack)

    return out[:n, :out_dim]


# -----------------------------------------------------------------------------
# Deterministic parameter init (xavier_normal_ weights, zero biases),
# mirroring PINN_Net.__init__ with layers = [in, n_hidden, width, out].
# -----------------------------------------------------------------------------
def init_pinn_params(layers, key):
    in_dim, n_hidden, width, out_dim = layers
    dims = [in_dim] + [width] * n_hidden + [out_dim]   # n_hidden + 1 linears
    params = []
    for i in range(len(dims) - 1):
        key, sub = jax.random.split(key)
        fan_in, fan_out = dims[i], dims[i + 1]
        std = (2.0 / (fan_in + fan_out)) ** 0.5         # xavier_normal, gain=1
        w = std * jax.random.normal(sub, (fan_in, fan_out), dtype=jnp.float32)
        b = jnp.zeros((fan_out,), dtype=jnp.float32)
        params.append((w, b))
    return params


# Pure-JAX reference of PINN_Net.forward for a correctness check.
# TODO(synk): the autograd-based losses (Dirichlet/Neumann/equation_mse) are
# host-level jax.grad compositions over this forward, not in-kernel ops.
def ref_forward(x, y, params):
    a = jnp.concatenate([x, y], axis=1)
    for i, (w, b) in enumerate(params):
        z = jnp.dot(a, w, precision=jax.lax.Precision.HIGHEST) + b
        a = jnp.tanh(z) if i < len(params) - 1 else z
    return a


if __name__ == "__main__":
    # layers = [input_dim=2, num_hidden_layers=4, hidden_width=32, output_dim=3]
    layers = [2, 4, 32, 3]
    key = jax.random.PRNGKey(0)
    params = init_pinn_params(layers, key)
    # f32 packing by default; bf16 MXU operands are pack_params(dtype=bf16)
    # once PINN derivative accuracy has been validated.
    w_stack, b_stack, layer_dims = pack_params(params)

    key, kx, ky = jax.random.split(key, 3)
    n = 256
    x = jax.random.uniform(kx, (n, 1), dtype=jnp.float32)   # spatial coord x
    y = jax.random.uniform(ky, (n, 1), dtype=jnp.float32)   # spatial coord y

    out = pinn_forward(x, y, w_stack, b_stack, layer_dims)
    out = jax.block_until_ready(out)

    ref = ref_forward(x, y, params)
    assert out.shape == (n, 3)
    max_err = float(jnp.max(jnp.abs(out - ref)))
    assert jnp.allclose(out, ref, atol=1e-4, rtol=1e-4), f"mismatch {max_err}"

    print("KERNEL_OK")
</pallas_src>

<mosaic_0001>
module attributes {stable_mosaic.version = 11 : i64} {
  func.func @pinn_mlp_kernel(%arg0: i32, %arg1: memref<256x1xf32, #tpu.memory_space<vmem>>, %arg2: memref<256x1xf32, #tpu.memory_space<vmem>>, %arg3: memref<5x128x128xf32, #tpu.memory_space<vmem>>, %arg4: memref<5x1x128xf32, #tpu.memory_space<vmem>>, %arg5: memref<256x8xf32, #tpu.memory_space<vmem>>) attributes {dimension_semantics = [#tpu.dimension_semantics<parallel>], iteration_bounds = array<i64: 1>, scalar_prefetch = 0 : i64, scratch_operands = 0 : i64, tpu.core_type = #tpu.core_type<tc>, window_params = [{transform_indices = @transform_0, window_bounds = array<i64: 256, 1>}, {transform_indices = @transform_1, window_bounds = array<i64: 256, 1>}, {pipeline_mode = #tpu.pipeline_mode<synchronous>, transform_indices = @transform_2, window_bounds = array<i64: 5, 128, 128>}, {pipeline_mode = #tpu.pipeline_mode<synchronous>, transform_indices = @transform_3, window_bounds = array<i64: 5, 1, 128>}, {transform_indices = @transform_4, window_bounds = array<i64: 256, 8>}]} {
    %c0 = arith.constant 0 : index
    %c0_0 = arith.constant 0 : index
    %0 = vector.load %arg1[%c0, %c0_0] : memref<256x1xf32, #tpu.memory_space<vmem>>, vector<256x1xf32>
    %c0_1 = arith.constant 0 : index
    %c0_2 = arith.constant 0 : index
    %1 = vector.load %arg2[%c0_1, %c0_2] : memref<256x1xf32, #tpu.memory_space<vmem>>, vector<256x1xf32>
    %c0_3 = arith.constant 0 : index
    %c0_4 = arith.constant 0 : index
    %c0_5 = arith.constant 0 : index
    %2 = vector.load %arg3[%c0_3, %c0_4, %c0_5] : memref<5x128x128xf32, #tpu.memory_space<vmem>>, vector<1x1x128xf32>
    %3 = vector.shape_cast %2 : vector<1x1x128xf32> to vector<1x128xf32>
    %4 = vector.broadcast %0 : vector<256x1xf32> to vector<256x128xf32>
    %5 = vector.broadcast %3 : vector<1x128xf32> to vector<256x128xf32>
    %6 = arith.mulf %4, %5 : vector<256x128xf32>
    %c0_6 = arith.constant 0 : index
    %c1 = arith.constant 1 : index
    %c0_7 = arith.constant 0 : index
    %7 = vector.load %arg3[%c0_6, %c1, %c0_7] : memref<5x128x128xf32, #tpu.memory_space<vmem>>, vector<1x1x128xf32>
    %8 = vector.shape_cast %7 : vector<1x1x128xf32> to vector<1x128xf32>
    %9 = vector.broadcast %1 : vector<256x1xf32> to vector<256x128xf32>
    %10 = vector.broadcast %8 : vector<1x128xf32> to vector<256x128xf32>
    %11 = arith.mulf %9, %10 : vector<256x128xf32>
    %12 = arith.addf %6, %11 : vector<256x128xf32>
    %c0_8 = arith.constant 0 : index
    %c0_9 = arith.constant 0 : index
    %c0_10 = arith.constant 0 : index
    %13 = vector.load %arg4[%c0_8, %c0_9, %c0_10] : memref<5x1x128xf32, #tpu.memory_space<vmem>>, vector<1x1x128xf32>
    %14 = vector.shape_cast %13 : vector<1x1x128xf32> to vector<1x128xf32>
    %15 = vector.broadcast %14 : vector<1x128xf32> to vector<256x128xf32>
    %16 = arith.addf %12, %15 : vector<256x128xf32>
    %17 = math.tanh %16 : vector<256x128xf32>
    %c1_11 = arith.constant 1 : index
    %c0_12 = arith.constant 0 : index
    %c0_13 = arith.constant 0 : index
    %18 = vector.load %arg3[%c1_11, %c0_12, %c0_13] : memref<5x128x128xf32, #tpu.memory_space<vmem>>, vector<1x128x128xf32>
    %19 = vector.shape_cast %18 : vector<1x128x128xf32> to vector<128x128xf32>
    %cst = arith.constant dense<0.000000e+00> : vector<256x128xf32>
    %20 = tpu.matmul %17, %19, %cst {dimension_numbers = #tpu.dot_dimension_numbers<[1], [0], [0], [1], [0, 0, 1, 1], [], []>} : vector<256x128xf32>, vector<128x128xf32>, vector<256x128xf32> -> vector<256x128xf32>
    %c1_14 = arith.constant 1 : index
    %c0_15 = arith.constant 0 : index
    %c0_16 = arith.constant 0 : index
    %21 = vector.load %arg4[%c1_14, %c0_15, %c0_16] : memref<5x1x128xf32, #tpu.memory_space<vmem>>, vector<1x1x128xf32>
    %22 = vector.shape_cast %21 : vector<1x1x128xf32> to vector<1x128xf32>
    %23 = vector.broadcast %22 : vector<1x128xf32> to vector<256x128xf32>
    %24 = arith.addf %20, %23 : vector<256x128xf32>
    %25 = math.tanh %24 : vector<256x128xf32>
    %c2 = arith.constant 2 : index
    %c0_17 = arith.constant 0 : index
    %c0_18 = arith.constant 0 : index
    %26 = vector.load %arg3[%c2, %c0_17, %c0_18] : memref<5x128x128xf32, #tpu.memory_space<vmem>>, vector<1x128x128xf32>
    %27 = vector.shape_cast %26 : vector<1x128x128xf32> to vector<128x128xf32>
    %cst_19 = arith.constant dense<0.000000e+00> : vector<256x128xf32>
    %28 = tpu.matmul %25, %27, %cst_19 {dimension_numbers = #tpu.dot_dimension_numbers<[1], [0], [0], [1], [0, 0, 1, 1], [], []>} : vector<256x128xf32>, vector<128x128xf32>, vector<256x128xf32> -> vector<256x128xf32>
    %c2_20 = arith.constant 2 : index
    %c0_21 = arith.constant 0 : index
    %c0_22 = arith.constant 0 : index
    %29 = vector.load %arg4[%c2_20, %c0_21, %c0_22] : memref<5x1x128xf32, #tpu.memory_space<vmem>>, vector<1x1x128xf32>
    %30 = vector.shape_cast %29 : vector<1x1x128xf32> to vector<1x128xf32>
    %31 = vector.broadcast %30 : vector<1x128xf32> to vector<256x128xf32>
    %32 = arith.addf %28, %31 : vector<256x128xf32>
    %33 = math.tanh %32 : vector<256x128xf32>
    %c3 = arith.constant 3 : index
    %c0_23 = arith.constant 0 : index
    %c0_24 = arith.constant 0 : index
    %34 = vector.load %arg3[%c3, %c0_23, %c0_24] : memref<5x128x128xf32, #tpu.memory_space<vmem>>, vector<1x128x128xf32>
    %35 = vector.shape_cast %34 : vector<1x128x128xf32> to vector<128x128xf32>
    %cst_25 = arith.constant dense<0.000000e+00> : vector<256x128xf32>
    %36 = tpu.matmul %33, %35, %cst_25 {dimension_numbers = #tpu.dot_dimension_numbers<[1], [0], [0], [1], [0, 0, 1, 1], [], []>} : vector<256x128xf32>, vector<128x128xf32>, vector<256x128xf32> -> vector<256x128xf32>
    %c3_26 = arith.constant 3 : index
    %c0_27 = arith.constant 0 : index
    %c0_28 = arith.constant 0 : index
    %37 = vector.load %arg4[%c3_26, %c0_27, %c0_28] : memref<5x1x128xf32, #tpu.memory_space<vmem>>, vector<1x1x128xf32>
    %38 = vector.shape_cast %37 : vector<1x1x128xf32> to vector<1x128xf32>
    %39 = vector.broadcast %38 : vector<1x128xf32> to vector<256x128xf32>
    %40 = arith.addf %36, %39 : vector<256x128xf32>
    %41 = math.tanh %40 : vector<256x128xf32>
    %c4 = arith.constant 4 : index
    %c0_29 = arith.constant 0 : index
    %c0_30 = arith.constant 0 : index
    %42 = vector.load %arg3[%c4, %c0_29, %c0_30] : memref<5x128x128xf32, #tpu.memory_space<vmem>>, vector<1x128x128xf32>
    %43 = vector.shape_cast %42 : vector<1x128x128xf32> to vector<128x128xf32>
    %cst_31 = arith.constant dense<0.000000e+00> : vector<256x128xf32>
    %44 = tpu.matmul %41, %43, %cst_31 {dimension_numbers = #tpu.dot_dimension_numbers<[1], [0], [0], [1], [0, 0, 1, 1], [], []>} : vector<256x128xf32>, vector<128x128xf32>, vector<256x128xf32> -> vector<256x128xf32>
    %c4_32 = arith.constant 4 : index
    %c0_33 = arith.constant 0 : index
    %c0_34 = arith.constant 0 : index
    %45 = vector.load %arg4[%c4_32, %c0_33, %c0_34] : memref<5x1x128xf32, #tpu.memory_space<vmem>>, vector<1x1x128xf32>
    %46 = vector.shape_cast %45 : vector<1x1x128xf32> to vector<1x128xf32>
    %47 = vector.broadcast %46 : vector<1x128xf32> to vector<256x128xf32>
    %48 = arith.addf %44, %47 : vector<256x128xf32>
    %49 = vector.extract_strided_slice %48 {offsets = [0, 0], sizes = [256, 8], strides = [1, 1]} : vector<256x128xf32> to vector<256x8xf32>
    %c0_35 = arith.constant 0 : index
    %c0_36 = arith.constant 0 : index
    %50 = vector.load %arg5[%c0_35, %c0_36] : memref<256x8xf32, #tpu.memory_space<vmem>>, vector<256x8xf32>
    tpu.vector_store %arg5[%c0_35, %c0_36], %49 {strides = array<i32>} : memref<256x8xf32, #tpu.memory_space<vmem>>, vector<256x8xf32>,
    return
  }
  func.func @transform_0(%arg0: i32) -> (i32, i32) {
    %c0_i32 = arith.constant 0 : i32
    %c0_i32_0 = arith.constant 0 : i32
    return %arg0, %c0_i32 : i32, i32
  }
  func.func @transform_1(%arg0: i32) -> (i32, i32) {
    %c0_i32 = arith.constant 0 : i32
    %c0_i32_0 = arith.constant 0 : i32
    return %arg0, %c0_i32 : i32, i32
  }
  func.func @transform_2(%arg0: i32) -> (i32, i32, i32) {
    %c0_i32 = arith.constant 0 : i32
    %c0_i32_0 = arith.constant 0 : i32
    %c0_i32_1 = arith.constant 0 : i32
    %c0_i32_2 = arith.constant 0 : i32
    return %c0_i32, %c0_i32_0, %c0_i32_1 : i32, i32, i32
  }
  func.func @transform_3(%arg0: i32) -> (i32, i32, i32) {
    %c0_i32 = arith.constant 0 : i32
    %c0_i32_0 = arith.constant 0 : i32
    %c0_i32_1 = arith.constant 0 : i32
    %c0_i32_2 = arith.constant 0 : i32
    return %c0_i32, %c0_i32_0, %c0_i32_1 : i32, i32, i32
  }
  func.func @transform_4(%arg0: i32) -> (i32, i32) {
    %c0_i32 = arith.constant 0 : i32
    %c0_i32_0 = arith.constant 0 : i32
    return %arg0, %c0_i32 : i32, i32
  }
}

</mosaic_0001>

<llo_original>
// kernel: tpu_custom_call.1
$region0: #{tpu_custom_call.1}
  #allocation0 [shape = 'u32[]', space=smem, size = 0x4, offset = 0x4, fixed_abs, tag = 'smem constant byte address 0x4 - core index']
  #allocation1 [shape = 'u32[144,128]{1,0:T(1,128)}', space=vmem, size = 0x12000, scoped, tag = 'internal scratch']
  %s0 = inlined_call_operand.vmem [shape: f32[256,1], index: 0, kind: input, shape index: {}]
  %s1 = inlined_call_operand.vmem [shape: f32[256,1], index: 1, kind: input, shape index: {}]
  %s2 = inlined_call_operand.hbm [shape: f32[5,128,128], index: 2, kind: input, shape index: {}]
  %s3 = inlined_call_operand.vmem [shape: f32[5,1,128], index: 3, kind: input, shape index: {}]
  %s4 = inlined_call_operand.vmem [shape: f32[256,8], index: 4, kind: output, shape index: {}]
  %s5 = sld [smem:[#allocation0]]
  $region30: #{tpu_custom_call.1} parent=0
    _
  %s7 = ssub.s32 1, %s5
  %s8 = scalar_select 0, %s7, %s5
  $region1: #{tpu_custom_call.1} parent=0
    #allocation2 [shape = 'u8[327680]{0}', space=vmem, size = 0x50000, scoped, tag = 'input window, operand 2, single buffered']
    #allocation3 [shape = 's32[1]{0}', space=sflag, size = 0x4, scoped, tag = 'scoped memory for tpu_custom_call.1']
    %9 = vsyncpa [#allocation3], 0
    // Predicated region
    $region2: #{tpu_custom_call.1} parent=1 // pred_check
      _
    $region3: #{tpu_custom_call.1} parent=1 // pred_check_branch
      %11 = sbr.rel (0) target = $region5
    $region4: #{tpu_custom_call.1} parent=1 // pred_region
      _
    $region5: #{tpu_custom_call.1} parent=1 // pred_fallthru
      _
    // Predicated region
    $region6: #{tpu_custom_call.1} parent=1 // pred_check
      _
    $region7: #{tpu_custom_call.1} parent=1 // pred_check_branch
      %13 = sbr.rel (0) target = $region9
    $region8: #{tpu_custom_call.1} parent=1 // pred_region
      _
    $region9: #{tpu_custom_call.1} parent=1 // pred_fallthru
      _
    // Predicated region
    $region10: #{tpu_custom_call.1} parent=1 // pred_check
      _
    $region11: #{tpu_custom_call.1} parent=1 // pred_check_branch
      %15 = sbr.rel (0) target = $region13
    $region12: #{tpu_custom_call.1} parent=1 // pred_region
      %s17 = ssub.s32 10240, 10240
      %18 = vsyncadd [#allocation3], %s17
      %s19 = sshll.u32 [#allocation2], 4
      %s20 = int_to_ptr.vmem [resolvable:$true] %s19
      %25 = dma.hbm_to_vmem [thread:$0]  %s2, 10240, %s20, [#allocation3], 128, 128, 8
    $region13: #{tpu_custom_call.1} parent=1 // pred_fallthru
      _
    // Predicated region
    $region14: #{tpu_custom_call.1} parent=1 // pred_check
      _
    $region15: #{tpu_custom_call.1} parent=1 // pred_check_branch
      %27 = sbr.rel (0) target = $region17
    $region16: #{tpu_custom_call.1} parent=1 // pred_region
      _
    $region17: #{tpu_custom_call.1} parent=1 // pred_fallthru
      _
    // Predicated region
    $region18: #{tpu_custom_call.1} parent=1 // pred_check
      _
    $region19: #{tpu_custom_call.1} parent=1 // pred_check_branch
      %29 = sbr.rel (0) target = $region21
    $region20: #{tpu_custom_call.1} parent=1 // pred_region
      %30 = dma.done [#allocation3], 10240
    $region21: #{tpu_custom_call.1} parent=1 // pred_fallthru
      _
    %v31 = vld [vmem:[%s0] sm:$0xff]
    %v32 = vld [vmem:[%s0 + $0x8] sm:$0xff]
    %v33 = vld [vmem:[%s0 + $0x10] sm:$0xff]
    %v34 = vld [vmem:[%s0 + $0x18] sm:$0xff]
    %v35 = vld [vmem:[%s0 + $0x20] sm:$0xff]
    %v36 = vld [vmem:[%s0 + $0x28] sm:$0xff]
    %v37 = vld [vmem:[%s0 + $0x30] sm:$0xff]
    %v38 = vld [vmem:[%s0 + $0x38] sm:$0xff]
    %v39 = vld [vmem:[%s0 + $0x40] sm:$0xff]
    %v40 = vld [vmem:[%s0 + $0x48] sm:$0xff]
    %v41 = vld [vmem:[%s0 + $0x50] sm:$0xff]
    %v42 = vld [vmem:[%s0 + $0x58] sm:$0xff]
    %v43 = vld [vmem:[%s0 + $0x60] sm:$0xff]
    %v44 = vld [vmem:[%s0 + $0x68] sm:$0xff]
    %v45 = vld [vmem:[%s0 + $0x70] sm:$0xff]
    %v46 = vld [vmem:[%s0 + $0x78] sm:$0xff]
    %v47 = vld [vmem:[%s0 + $0x80] sm:$0xff]
    %v48 = vld [vmem:[%s0 + $0x88] sm:$0xff]
    %v49 = vld [vmem:[%s0 + $0x90] sm:$0xff]
    %v50 = vld [vmem:[%s0 + $0x98] sm:$0xff]
    %v51 = vld [vmem:[%s0 + $0xa0] sm:$0xff]
    %v52 = vld [vmem:[%s0 + $0xa8] sm:$0xff]
    %v53 = vld [vmem:[%s0 + $0xb0] sm:$0xff]
    %v54 = vld [vmem:[%s0 + $0xb8] sm:$0xff]
    %v55 = vld [vmem:[%s0 + $0xc0] sm:$0xff]
    %v56 = vld [vmem:[%s0 + $0xc8] sm:$0xff]
    %v57 = vld [vmem:[%s0 + $0xd0] sm:$0xff]
    %v58 = vld [vmem:[%s0 + $0xd8] sm:$0xff]
    %v59 = vld [vmem:[%s0 + $0xe0] sm:$0xff]
    %v60 = vld [vmem:[%s0 + $0xe8] sm:$0xff]
    %v61 = vld [vmem:[%s0 + $0xf0] sm:$0xff]
    %v62 = vld [vmem:[%s0 + $0xf8] sm:$0xff]
    %v63 = vld [vmem:[%s1] sm:$0xff]
    %v64 = vld [vmem:[%s1 + $0x8] sm:$0xff]
    %v65 = vld [vmem:[%s1 + $0x10] sm:$0xff]
    %v66 = vld [vmem:[%s1 + $0x18] sm:$0xff]
    %v67 = vld [vmem:[%s1 + $0x20] sm:$0xff]
    %v68 = vld [vmem:[%s1 + $0x28] sm:$0xff]
    %v69 = vld [vmem:[%s1 + $0x30] sm:$0xff]
    %v70 = vld [vmem:[%s1 + $0x38] sm:$0xff]
    %v71 = vld [vmem:[%s1 + $0x40] sm:$0xff]
    %v72 = vld [vmem:[%s1 + $0x48] sm:$0xff]
    %v73 = vld [vmem:[%s1 + $0x50] sm:$0xff]
    %v74 = vld [vmem:[%s1 + $0x58] sm:$0xff]
    %v75 = vld [vmem:[%s1 + $0x60] sm:$0xff]
    %v76 = vld [vmem:[%s1 + $0x68] sm:$0xff]
    %v77 = vld [vmem:[%s1 + $0x70] sm:$0xff]
    %v78 = vld [vmem:[%s1 + $0x78] sm:$0xff]
    %v79 = vld [vmem:[%s1 + $0x80] sm:$0xff]
    %v80 = vld [vmem:[%s1 + $0x88] sm:$0xff]
    %v81 = vld [vmem:[%s1 + $0x90] sm:$0xff]
    %v82 = vld [vmem:[%s1 + $0x98] sm:$0xff]
    %v83 = vld [vmem:[%s1 + $0xa0] sm:$0xff]
    %v84 = vld [vmem:[%s1 + $0xa8] sm:$0xff]
    %v85 = vld [vmem:[%s1 + $0xb0] sm:$0xff]
    %v86 = vld [vmem:[%s1 + $0xb8] sm:$0xff]
    %v87 = vld [vmem:[%s1 + $0xc0] sm:$0xff]
    %v88 = vld [vmem:[%s1 + $0xc8] sm:$0xff]
    %v89 = vld [vmem:[%s1 + $0xd0] sm:$0xff]
    %v90 = vld [vmem:[%s1 + $0xd8] sm:$0xff]
    %v91 = vld [vmem:[%s1 + $0xe0] sm:$0xff]
    %v92 = vld [vmem:[%s1 + $0xe8] sm:$0xff]
    %v93 = vld [vmem:[%s1 + $0xf0] sm:$0xff]
    %v94 = vld [vmem:[%s1 + $0xf8] sm:$0xff]
    %v95 = vld [vmem:[#allocation2] sm:$0x1]
    %97 = vset.pattern.permute.xlu0 0
    %98 = vperm.xlu0 %97, %v31
    %v99 = vpop.permute.xlu0 %98
    %102 = vset.pattern.permute.xlu0 0
    %103 = vperm.xlu0 %102, %v32
    %v104 = vpop.permute.xlu0 %103
    %107 = vset.pattern.permute.xlu0 0
    %108 = vperm.xlu0 %107, %v33
    %v109 = vpop.permute.xlu0 %108
    %112 = vset.pattern.permute.xlu0 0
    %113 = vperm.xlu0 %112, %v34
    %v114 = vpop.permute.xlu0 %113
    %117 = vset.pattern.permute.xlu0 0
    %118 = vperm.xlu0 %117, %v35
    %v119 = vpop.permute.xlu0 %118
    %122 = vset.pattern.permute.xlu0 0
    %123 = vperm.xlu0 %122, %v36
    %v124 = vpop.permute.xlu0 %123
    %127 = vset.pattern.permute.xlu0 0
    %128 = vperm.xlu0 %127, %v37
    %v129 = vpop.permute.xlu0 %128
    %132 = vset.pattern.permute.xlu0 0
    %133 = vperm.xlu0 %132, %v38
    %v134 = vpop.permute.xlu0 %133
    %137 = vset.pattern.permute.xlu0 0
    %138 = vperm.xlu0 %137, %v39
    %v139 = vpop.permute.xlu0 %138
    %142 = vset.pattern.permute.xlu0 0
    %143 = vperm.xlu0 %142, %v40
    %v144 = vpop.permute.xlu0 %143
    %147 = vset.pattern.permute.xlu0 0
    %148 = vperm.xlu0 %147, %v41
    %v149 = vpop.permute.xlu0 %148
    %152 = vset.pattern.permute.xlu0 0
    %153 = vperm.xlu0 %152, %v42
    %v154 = vpop.permute.xlu0 %153
    %157 = vset.pattern.permute.xlu0 0
    %158 = vperm.xlu0 %157, %v43
    %v159 = vpop.permute.xlu0 %158
    %162 = vset.pattern.permute.xlu0 0
    %163 = vperm.xlu0 %162, %v44
    %v164 = vpop.permute.xlu0 %163
    %167 = vset.pattern.permute.xlu0 0
    %168 = vperm.xlu0 %167, %v45
    %v169 = vpop.permute.xlu0 %168
    %172 = vset.pattern.permute.xlu0 0
    %173 = vperm.xlu0 %172, %v46
    %v174 = vpop.permute.xlu0 %173
    %177 = vset.pattern.permute.xlu0 0
    %178 = vperm.xlu0 %177, %v47
    %v179 = vpop.permute.xlu0 %178
    %182 = vset.pattern.permute.xlu0 0
    %183 = vperm.xlu0 %182, %v48
    %v184 = vpop.permute.xlu0 %183
    %187 = vset.pattern.permute.xlu0 0
    %188 = vperm.xlu0 %187, %v49
    %v189 = vpop.permute.xlu0 %188
    %192 = vset.pattern.permute.xlu0 0
    %193 = vperm.xlu0 %192, %v50
    %v194 = vpop.permute.xlu0 %193
    %197 = vset.pattern.permute.xlu0 0
    %198 = vperm.xlu0 %197, %v51
    %v199 = vpop.permute.xlu0 %198
    %202 = vset.pattern.permute.xlu0 0
    %203 = vperm.xlu0 %202, %v52
    %v204 = vpop.permute.xlu0 %203
    %207 = vset.pattern.permute.xlu0 0
    %208 = vperm.xlu0 %207, %v53
    %v209 = vpop.permute.xlu0 %208
    %212 = vset.pattern.permute.xlu0 0
    %213 = vperm.xlu0 %212, %v54
    %v214 = vpop.permute.xlu0 %213
    %217 = vset.pattern.permute.xlu0 0
    %218 = vperm.xlu0 %217, %v55
    %v219 = vpop.permute.xlu0 %218
    %222 = vset.pattern.permute.xlu0 0
    %223 = vperm.xlu0 %222, %v56
    %v224 = vpop.permute.xlu0 %223
    %227 = vset.pattern.permute.xlu0 0
    %228 = vperm.xlu0 %227, %v57
    %v229 = vpop.permute.xlu0 %228
    %232 = vset.pattern.permute.xlu0 0
    %233 = vperm.xlu0 %232, %v58
    %v234 = vpop.permute.xlu0 %233
    %237 = vset.pattern.permute.xlu0 0
    %238 = vperm.xlu0 %237, %v59
    %v239 = vpop.permute.xlu0 %238
    %242 = vset.pattern.permute.xlu0 0
    %243 = vperm.xlu0 %242, %v60
    %v244 = vpop.permute.xlu0 %243
    %247 = vset.pattern.permute.xlu0 0
    %248 = vperm.xlu0 %247, %v61
    %v249 = vpop.permute.xlu0 %248
    %252 = vset.pattern.permute.xlu0 0
    %253 = vperm.xlu0 %252, %v62
    %v254 = vpop.permute.xlu0 %253
    %v256 = vlaneseq
    %v257 = vshrl.u32 %v256, 7
    %v258 = vsub.s32 0, %v257
    %v259 = vrot.slane %v95, %v258
    %v260 = vmul.f32 %v99, %v259
    %v261 = vmul.f32 %v104, %v259
    %v262 = vmul.f32 %v109, %v259
    %v263 = vmul.f32 %v114, %v259
    %v264 = vmul.f32 %v119, %v259
    %v265 = vmul.f32 %v124, %v259
    %v266 = vmul.f32 %v129, %v259
    %v267 = vmul.f32 %v134, %v259
    %v268 = vmul.f32 %v139, %v259
    %v269 = vmul.f32 %v144, %v259
    %v270 = vmul.f32 %v149, %v259
    %v271 = vmul.f32 %v154, %v259
    %v272 = vmul.f32 %v159, %v259
    %v273 = vmul.f32 %v164, %v259
    %v274 = vmul.f32 %v169, %v259
    %v275 = vmul.f32 %v174, %v259
    %v276 = vmul.f32 %v179, %v259
    %v277 = vmul.f32 %v184, %v259
    %v278 = vmul.f32 %v189, %v259
    %v279 = vmul.f32 %v194, %v259
    %v280 = vmul.f32 %v199, %v259
    %v281 = vmul.f32 %v204, %v259
    %v282 = vmul.f32 %v209, %v259
    %v283 = vmul.f32 %v214, %v259
    %v284 = vmul.f32 %v219, %v259
    %v285 = vmul.f32 %v224, %v259
    %v286 = vmul.f32 %v229, %v259
    %v287 = vmul.f32 %v234, %v259
    %v288 = vmul.f32 %v239, %v259
    %v289 = vmul.f32 %v244, %v259
    %v290 = vmul.f32 %v249, %v259
    %v291 = vmul.f32 %v254, %v259
    %v292 = vld [vmem:[#allocation2 + $0x1] sm:$0x1]
    %294 = vset.pattern.permute.xlu0 0
    %295 = vperm.xlu0 %294, %v63
    %v296 = vpop.permute.xlu0 %295
    %299 = vset.pattern.permute.xlu0 0
    %300 = vperm.xlu0 %299, %v64
    %v301 = vpop.permute.xlu0 %300
    %304 = vset.pattern.permute.xlu0 0
    %305 = vperm.xlu0 %304, %v65
    %v306 = vpop.permute.xlu0 %305
    %309 = vset.pattern.permute.xlu0 0
    %310 = vperm.xlu0 %309, %v66
    %v311 = vpop.permute.xlu0 %310
    %314 = vset.pattern.permute.xlu0 0
    %315 = vperm.xlu0 %314, %v67
    %v316 = vpop.permute.xlu0 %315
    %319 = vset.pattern.permute.xlu0 0
    %320 = vperm.xlu0 %319, %v68
    %v321 = vpop.permute.xlu0 %320
    %324 = vset.pattern.permute.xlu0 0
    %325 = vperm.xlu0 %324, %v69
    %v326 = vpop.permute.xlu0 %325
    %329 = vset.pattern.permute.xlu0 0
    %330 = vperm.xlu0 %329, %v70
    %v331 = vpop.permute.xlu0 %330
    %334 = vset.pattern.permute.xlu0 0
    %335 = vperm.xlu0 %334, %v71
    %v336 = vpop.permute.xlu0 %335
    %339 = vset.pattern.permute.xlu0 0
    %340 = vperm.xlu0 %339, %v72
    %v341 = vpop.permute.xlu0 %340
    %344 = vset.pattern.permute.xlu0 0
    %345 = vperm.xlu0 %344, %v73
    %v346 = vpop.permute.xlu0 %345
    %349 = vset.pattern.permute.xlu0 0
    %350 = vperm.xlu0 %349, %v74
    %v351 = vpop.permute.xlu0 %350
    %354 = vset.pattern.permute.xlu0 0
    %355 = vperm.xlu0 %354, %v75
    %v356 = vpop.permute.xlu0 %355
    %359 = vset.pattern.permute.xlu0 0
    %360 = vperm.xlu0 %359, %v76
    %v361 = vpop.permute.xlu0 %360
    %364 = vset.pattern.permute.xlu0 0
    %365 = vperm.xlu0 %364, %v77
    %v366 = vpop.permute.xlu0 %365
    %369 = vset.pattern.permute.xlu0 0
    %370 = vperm.xlu0 %369, %v78
    %v371 = vpop.permute.xlu0 %370
    %374 = vset.pattern.permute.xlu0 0
    %375 = vperm.xlu0 %374, %v79
    %v376 = vpop.permute.xlu0 %375
    %379 = vset.pattern.permute.xlu0 0
    %380 = vperm.xlu0 %379, %v80
    %v381 = vpop.permute.xlu0 %380
    %384 = vset.pattern.permute.xlu0 0
    %385 = vperm.xlu0 %384, %v81
    %v386 = vpop.permute.xlu0 %385
    %389 = vset.pattern.permute.xlu0 0
    %390 = vperm.xlu0 %389, %v82
    %v391 = vpop.permute.xlu0 %390
    %394 = vset.pattern.permute.xlu0 0
    %395 = vperm.xlu0 %394, %v83
    %v396 = vpop.permute.xlu0 %395
    %399 = vset.pattern.permute.xlu0 0
    %400 = vperm.xlu0 %399, %v84
    %v401 = vpop.permute.xlu0 %400
    %404 = vset.pattern.permute.xlu0 0
    %405 = vperm.xlu0 %404, %v85
    %v406 = vpop.permute.xlu0 %405
    %409 = vset.pattern.permute.xlu0 0
    %410 = vperm.xlu0 %409, %v86
    %v411 = vpop.permute.xlu0 %410
    %414 = vset.pattern.permute.xlu0 0
    %415 = vperm.xlu0 %414, %v87
    %v416 = vpop.permute.xlu0 %415
    %419 = vset.pattern.permute.xlu0 0
    %420 = vperm.xlu0 %419, %v88
    %v421 = vpop.permute.xlu0 %420
    %424 = vset.pattern.permute.xlu0 0
    %425 = vperm.xlu0 %424, %v89
    %v426 = vpop.permute.xlu0 %425
    %429 = vset.pattern.permute.xlu0 0
    %430 = vperm.xlu0 %429, %v90
    %v431 = vpop.permute.xlu0 %430
    %434 = vset.pattern.permute.xlu0 0
    %435 = vperm.xlu0 %434, %v91
    %v436 = vpop.permute.xlu0 %435
    %439 = vset.pattern.permute.xlu0 0
    %440 = vperm.xlu0 %439, %v92
    %v441 = vpop.permute.xlu0 %440
    %444 = vset.pattern.permute.xlu0 0
    %445 = vperm.xlu0 %444, %v93
    %v446 = vpop.permute.xlu0 %445
    %449 = vset.pattern.permute.xlu0 0
    %450 = vperm.xlu0 %449, %v94
    %v451 = vpop.permute.xlu0 %450
    %v453 = vlaneseq
    %v454 = vshrl.u32 %v453, 7
    %v455 = vsub.s32 0, %v454
    %v456 = vrot.slane %v292, %v455
    %v457 = vmul.f32 %v296, %v456
    %v458 = vmul.f32 %v301, %v456
    %v459 = vmul.f32 %v306, %v456
    %v460 = vmul.f32 %v311, %v456
    %v461 = vmul.f32 %v316, %v456
    %v462 = vmul.f32 %v321, %v456
    %v463 = vmul.f32 %v326, %v456
    %v464 = vmul.f32 %v331, %v456
    %v465 = vmul.f32 %v336, %v456
    %v466 = vmul.f32 %v341, %v456
    %v467 = vmul.f32 %v346, %v456
    %v468 = vmul.f32 %v351, %v456
    %v469 = vmul.f32 %v356, %v456
    %v470 = vmul.f32 %v361, %v456
    %v471 = vmul.f32 %v366, %v456
    %v472 = vmul.f32 %v371, %v456
    %v473 = vmul.f32 %v376, %v456
    %v474 = vmul.f32 %v381, %v456
    %v475 = vmul.f32 %v386, %v456
    %v476 = vmul.f32 %v391, %v456
    %v477 = vmul.f32 %v396, %v456
    %v478 = vmul.f32 %v401, %v456
    %v479 = vmul.f32 %v406, %v456
    %v480 = vmul.f32 %v411, %v456
    %v481 = vmul.f32 %v416, %v456
    %v482 = vmul.f32 %v421, %v456
    %v483 = vmul.f32 %v426, %v456
    %v484 = vmul.f32 %v431, %v456
    %v485 = vmul.f32 %v436, %v456
    %v486 = vmul.f32 %v441, %v456
    %v487 = vmul.f32 %v446, %v456
    %v488 = vmul.f32 %v451, %v456
    %v489 = vadd.f32 %v260, %v457
    %v490 = vadd.f32 %v261, %v458
    %v491 = vadd.f32 %v262, %v459
    %v492 = vadd.f32 %v263, %v460
    %v493 = vadd.f32 %v264, %v461
    %v494 = vadd.f32 %v265, %v462
    %v495 = vadd.f32 %v266, %v463
    %v496 = vadd.f32 %v267, %v464
    %v497 = vadd.f32 %v268, %v465
    %v498 = vadd.f32 %v269, %v466
    %v499 = vadd.f32 %v270, %v467
    %v500 = vadd.f32 %v271, %v468
    %v501 = vadd.f32 %v272, %v469
    %v502 = vadd.f32 %v273, %v470
    %v503 = vadd.f32 %v274, %v471
    %v504 = vadd.f32 %v275, %v472
    %v505 = vadd.f32 %v276, %v473
    %v506 = vadd.f32 %v277, %v474
    %v507 = vadd.f32 %v278, %v475
    %v508 = vadd.f32 %v279, %v476
    %v509 = vadd.f32 %v280, %v477
    %v510 = vadd.f32 %v281, %v478
    %v511 = vadd.f32 %v282, %v479
    %v512 = vadd.f32 %v283, %v480
    %v513 = vadd.f32 %v284, %v481
    %v514 = vadd.f32 %v285, %v482
    %v515 = vadd.f32 %v286, %v483
    %v516 = vadd.f32 %v287, %v484
    %v517 = vadd.f32 %v288, %v485
    %v518 = vadd.f32 %v289, %v486
    %v519 = vadd.f32 %v290, %v487
    %v520 = vadd.f32 %v291, %v488
    %v521 = vld [vmem:[%s3] sm:$0x1]
    %v523 = vlaneseq
    %v524 = vshrl.u32 %v523, 7
    %v525 = vsub.s32 0, %v524
    %v526 = vrot.slane %v521, %v525
    %v528 = vadd.f32 %v489, %v526
    %v529 = vadd.f32 %v490, %v526
    %v530 = vadd.f32 %v491, %v526
    %v531 = vadd.f32 %v492, %v526
    %v532 = vadd.f32 %v493, %v526
    %v533 = vadd.f32 %v494, %v526
    %v534 = vadd.f32 %v495, %v526
    %v535 = vadd.f32 %v496, %v526
    %v536 = vadd.f32 %v497, %v526
    %v537 = vadd.f32 %v498, %v526
    %v538 = vadd.f32 %v499, %v526
    %v539 = vadd.f32 %v500, %v526
    %v540 = vadd.f32 %v501, %v526
    %v541 = vadd.f32 %v502, %v526
    %v542 = vadd.f32 %v503, %v526
    %v543 = vadd.f32 %v504, %v526
    %v544 = vadd.f32 %v505, %v526
    %v545 = vadd.f32 %v506, %v526
    %v546 = vadd.f32 %v507, %v526
    %v547 = vadd.f32 %v508, %v526
    %v548 = vadd.f32 %v509, %v526
    %v549 = vadd.f32 %v510, %v526
    %v550 = vadd.f32 %v511, %v526
    %v551 = vadd.f32 %v512, %v526
    %v552 = vadd.f32 %v513, %v526
    %v553 = vadd.f32 %v514, %v526
    %v554 = vadd.f32 %v515, %v526
    %v555 = vadd.f32 %v516, %v526
    %v556 = vadd.f32 %v517, %v526
    %v557 = vadd.f32 %v518, %v526
    %v558 = vadd.f32 %v519, %v526
    %v559 = vadd.f32 %v520, %v526
    %v560 = vtanh.pop %v528
    %v561 = vtanh.pop %v529
    %v562 = vtanh.pop %v530
    %v563 = vtanh.pop %v531
    %v564 = vtanh.pop %v532
    %v565 = vtanh.pop %v533
    %v566 = vtanh.pop %v534
    %v567 = vtanh.pop %v535
    %v568 = vtanh.pop %v536
    %v569 = vtanh.pop %v537
    %v570 = vtanh.pop %v538
    %v571 = vtanh.pop %v539
    %v572 = vtanh.pop %v540
    %v573 = vtanh.pop %v541
    %v574 = vtanh.pop %v542
    %v575 = vtanh.pop %v543
    %v576 = vtanh.pop %v544
    %v577 = vtanh.pop %v545
    %v578 = vtanh.pop %v546
    %v579 = vtanh.pop %v547
    %v580 = vtanh.pop %v548
    %v581 = vtanh.pop %v549
    %v582 = vtanh.pop %v550
    %v583 = vtanh.pop %v551
    %v584 = vtanh.pop %v552
    %v585 = vtanh.pop %v553
    %v586 = vtanh.pop %v554
    %v587 = vtanh.pop %v555
    %v588 = vtanh.pop %v556
    %v589 = vtanh.pop %v557
    %v590 = vtanh.pop %v558
    %v591 = vtanh.pop %v559
    %s592 = scalar_lea.vmem [#allocation2], 128
    %v593 = vld [vmem:[%s592] sm:$0xff]
    %v594 = vld [vmem:[%s592 + $0x8] sm:$0xff]
    %v595 = vld [vmem:[%s592 + $0x10] sm:$0xff]
    %v596 = vld [vmem:[%s592 + $0x18] sm:$0xff]
    %v597 = vld [vmem:[%s592 + $0x20] sm:$0xff]
    %v598 = vld [vmem:[%s592 + $0x28] sm:$0xff]
    %v599 = vld [vmem:[%s592 + $0x30] sm:$0xff]
    %v600 = vld [vmem:[%s592 + $0x38] sm:$0xff]
    %v601 = vld [vmem:[%s592 + $0x40] sm:$0xff]
    %v602 = vld [vmem:[%s592 + $0x48] sm:$0xff]
    %v603 = vld [vmem:[%s592 + $0x50] sm:$0xff]
    %v604 = vld [vmem:[%s592 + $0x58] sm:$0xff]
    %v605 = vld [vmem:[%s592 + $0x60] sm:$0xff]
    %v606 = vld [vmem:[%s592 + $0x68] sm:$0xff]
    %v607 = vld [vmem:[%s592 + $0x70] sm:$0xff]
    %v608 = vld [vmem:[%s592 + $0x78] sm:$0xff]
    %s609 = scalar_lea.vmem %s3, 1
    %v610 = vld [vmem:[%s609] sm:$0x1]
    %v612 = vlaneseq
    %v613 = vshrl.u32 %v612, 7
    %v614 = vsub.s32 0, %v613
    %v615 = vrot.slane %v610, %v614
    %617 = vmatprep.subr.mxu0 0.0
    %618 = vmatpush1.msra.mxu0 %v593
    %619 = vmatprep.subr.mxu0 0.0
    %620 = vmatpush1.msra.mxu0 %v594
    %621 = vmatprep.subr.mxu0 0.0
    %622 = vmatpush1.msra.mxu0 %v595
    %623 = vmatprep.subr.mxu0 0.0
    %624 = vmatpush1.msra.mxu0 %v596
    %625 = vmatprep.subr.mxu0 0.0
    %626 = vmatpush1.msra.mxu0 %v597
    %627 = vmatprep.subr.mxu0 0.0
    %628 = vmatpush1.msra.mxu0 %v598
    %629 = vmatprep.subr.mxu0 0.0
    %630 = vmatpush1.msra.mxu0 %v599
    %631 = vmatprep.subr.mxu0 0.0
    %632 = vmatpush1.msra.mxu0 %v600
    %633 = vmatprep.subr.mxu0 0.0
    %634 = vmatpush1.msra.mxu0 %v601
    %635 = vmatprep.subr.mxu0 0.0
    %636 = vmatpush1.msra.mxu0 %v602
    %637 = vmatprep.subr.mxu0 0.0
    %638 = vmatpush1.msra.mxu0 %v603
    %639 = vmatprep.subr.mxu0 0.0
    %640 = vmatpush1.msra.mxu0 %v604
    %641 = vmatprep.subr.mxu0 0.0
    %642 = vmatpush1.msra.mxu0 %v605
    %643 = vmatprep.subr.mxu0 0.0
    %644 = vmatpush1.msra.mxu0 %v606
    %645 = vmatprep.subr.mxu0 0.0
    %646 = vmatpush1.msra.mxu0 %v607
    %647 = vmatprep.subr.mxu0 0.0
    %648 = vmatpush1.msra.mxu0 %v608
    %649 = vmatprep.subr.mxu0 0.0
    %650 = vmatpush1.msra.mxu0 0.0
    %651 = vmatprep.subr.mxu0 0.0
    %652 = vmatpush1.msra.mxu0 0.0
    %653 = vmatprep.subr.mxu0 0.0
    %654 = vmatpush1.msra.mxu0 0.0
    %655 = vmatprep.subr.mxu0 0.0
    %656 = vmatpush1.msra.mxu0 0.0
    %657 = vmatprep.subr.mxu0 0.0
    %658 = vmatpush1.msra.mxu0 0.0
    %659 = vmatprep.subr.mxu0 0.0
    %660 = vmatpush1.msra.mxu0 0.0
    %661 = vmatprep.subr.mxu0 0.0
    %662 = vmatpush1.msra.mxu0 0.0
    %663 = vmatprep.subr.mxu0 0.0
    %664 = vmatpush1.msra.mxu0 0.0
    %665 = vmatprep.subr.mxu0 0.0
    %666 = vmatpush1.msra.mxu0 0.0
    %667 = vmatprep.subr.mxu0 0.0
    %668 = vmatpush1.msra.mxu0 0.0
    %669 = vmatprep.subr.mxu0 0.0
    %670 = vmatpush1.msra.mxu0 0.0
    %671 = vmatprep.subr.mxu0 0.0
    %672 = vmatpush1.msra.mxu0 0.0
    %673 = vmatprep.subr.mxu0 0.0
    %674 = vmatpush1.msra.mxu0 0.0
    %675 = vmatprep.subr.mxu0 0.0
    %676 = vmatpush1.msra.mxu0 0.0
    %677 = vmatprep.subr.mxu0 0.0
    %678 = vmatpush1.msra.mxu0 0.0
    %679 = vmatprep.subr.mxu0 0.0
    %680 = vmatpush1.msra.mxu0 0.0
    %681 = vmatprep.mubr.f32.mxu0 0.0
    %682 = vmatmul.mubr.f32.gmra.mrb[0].mxu0 %v560
    %v683 = vpop.f32.mrb[0].mxu0
    %v684 = vadd.f32 %v615, %v683
    %v685 = vpop.f32.mrb[0].mxu0
    %686 = vmatprep.mubr.f32.mxu0 0.0
    %687 = vmatmul.mubr.f32.gmra.mrb[0].mxu0 %v561
    %v688 = vpop.f32.mrb[0].mxu0
    %v689 = vadd.f32 %v615, %v688
    %v690 = vpop.f32.mrb[0].mxu0
    %691 = vmatprep.mubr.f32.mxu0 0.0
    %692 = vmatmul.mubr.f32.gmra.mrb[0].mxu0 %v562
    %v693 = vpop.f32.mrb[0].mxu0
    %v694 = vadd.f32 %v615, %v693
    %v695 = vpop.f32.mrb[0].mxu0
    %696 = vmatprep.mubr.f32.mxu0 0.0
    %697 = vmatmul.mubr.f32.gmra.mrb[0].mxu0 %v563
    %v698 = vpop.f32.mrb[0].mxu0
    %v699 = vadd.f32 %v615, %v698
    %v700 = vpop.f32.mrb[0].mxu0
    %701 = vmatprep.mubr.f32.mxu0 0.0
    %702 = vmatmul.mubr.f32.gmra.mrb[0].mxu0 %v564
    %v703 = vpop.f32.mrb[0].mxu0
    %v704 = vadd.f32 %v615, %v703
    %v705 = vpop.f32.mrb[0].mxu0
    %706 = vmatprep.mubr.f32.mxu0 0.0
    %707 = vmatmul.mubr.f32.gmra.mrb[0].mxu0 %v565
    %v708 = vpop.f32.mrb[0].mxu0
    %v709 = vadd.f32 %v615, %v708
    %v710 = vpop.f32.mrb[0].mxu0
    %711 = vmatprep.mubr.f32.mxu0 0.0
    %712 = vmatmul.mubr.f32.gmra.mrb[0].mxu0 %v566
    %v713 = vpop.f32.mrb[0].mxu0
    %v714 = vadd.f32 %v615, %v713
    %v715 = vpop.f32.mrb[0].mxu0
    %716 = vmatprep.mubr.f32.mxu0 0.0
    %717 = vmatmul.mubr.f32.gmra.mrb[0].mxu0 %v567
    %v718 = vpop.f32.mrb[0].mxu0
    %v719 = vadd.f32 %v615, %v718
    %v720 = vpop.f32.mrb[0].mxu0
    %721 = vmatprep.mubr.f32.mxu0 0.0
    %722 = vmatmul.mubr.f32.gmra.mrb[0].mxu0 %v568
    %v723 = vpop.f32.mrb[0].mxu0
    %v724 = vadd.f32 %v615, %v723
    %v725 = vpop.f32.mrb[0].mxu0
    %726 = vmatprep.mubr.f32.mxu0 0.0
    %727 = vmatmul.mubr.f32.gmra.mrb[0].mxu0 %v569
    %v728 = vpop.f32.mrb[0].mxu0
    %v729 = vadd.f32 %v615, %v728
    %v730 = vpop.f32.mrb[0].mxu0
    %731 = vmatprep.mubr.f32.mxu0 0.0
    %732 = vmatmul.mubr.f32.gmra.mrb[0].mxu0 %v570
    %v733 = vpop.f32.mrb[0].mxu0
    %v734 = vadd.f32 %v615, %v733
    %v735 = vpop.f32.mrb[0].mxu0
    %736 = vmatprep.mubr.f32.mxu0 0.0
    %737 = vmatmul.mubr.f32.gmra.mrb[0].mxu0 %v571
    %v738 = vpop.f32.mrb[0].mxu0
    %v739 = vadd.f32 %v615, %v738
    %v740 = vpop.f32.mrb[0].mxu0
    %741 = vmatprep.mubr.f32.mxu0 0.0
    %742 = vmatmul.mubr.f32.gmra.mrb[0].mxu0 %v572
    %v743 = vpop.f32.mrb[0].mxu0
    %v744 = vadd.f32 %v615, %v743
    %v745 = vpop.f32.mrb[0].mxu0
    %746 = vmatprep.mubr.f32.mxu0 0.0
    %747 = vmatmul.mubr.f32.gmra.mrb[0].mxu0 %v573
    %v748 = vpop.f32.mrb[0].mxu0
    %v749 = vadd.f32 %v615, %v748
    %v750 = vpop.f32.mrb[0].mxu0
    %751 = vmatprep.mubr.f32.mxu0 0.0
    %752 = vmatmul.mubr.f32.gmra.mrb[0].mxu0 %v574
    %v753 = vpop.f32.mrb[0].mxu0
    %v754 = vadd.f32 %v615, %v753
    %v755 = vpop.f32.mrb[0].mxu0
    %756 = vmatprep.mubr.f32.mxu0 0.0
    %757 = vmatmul.mubr.f32.gmra.mrb[0].mxu0 %v575
    %v758 = vpop.f32.mrb[0].mxu0
    %v759 = vadd.f32 %v615, %v758
    %v760 = vpop.f32.mrb[0].mxu0
    %761 = vmatprep.mubr.f32.mxu0 0.0
    %762 = vmatmul.mubr.f32.gmra.mrb[0].mxu0 %v576
    %v763 = vpop.f32.mrb[0].mxu0
    %v764 = vadd.f32 %v615, %v763
    %v765 = vpop.f32.mrb[0].mxu0
    %766 = vmatprep.mubr.f32.mxu0 0.0
    %767 = vmatmul.mubr.f32.gmra.mrb[0].mxu0 %v577
    %v768 = vpop.f32.mrb[0].mxu0
    %v769 = vadd.f32 %v615, %v768
    %v770 = vpop.f32.mrb[0].mxu0
    %771 = vmatprep.mubr.f32.mxu0 0.0
    %772 = vmatmul.mubr.f32.gmra.mrb[0].mxu0 %v578
    %v773 = vpop.f32.mrb[0].mxu0
    %v774 = vadd.f32 %v615, %v773
    %v775 = vpop.f32.mrb[0].mxu0
    %776 = vmatprep.mubr.f32.mxu0 0.0
    %777 = vmatmul.mubr.f32.gmra.mrb[0].mxu0 %v579
    %v778 = vpop.f32.mrb[0].mxu0
    %v779 = vadd.f32 %v615, %v778
    %v780 = vpop.f32.mrb[0].mxu0
    %781 = vmatprep.mubr.f32.mxu0 0.0
    %782 = vmatmul.mubr.f32.gmra.mrb[0].mxu0 %v580
    %v783 = vpop.f32.mrb[0].mxu0
    %v784 = vadd.f32 %v615, %v783
    %v785 = vpop.f32.mrb[0].mxu0
    %786 = vmatprep.mubr.f32.mxu0 0.0
    %787 = vmatmul.mubr.f32.gmra.mrb[0].mxu0 %v581
    %v788 = vpop.f32.mrb[0].mxu0
    %v789 = vadd.f32 %v615, %v788
    %v790 = vpop.f32.mrb[0].mxu0
    %791 = vmatprep.mubr.f32.mxu0 0.0
    %792 = vmatmul.mubr.f32.gmra.mrb[0].mxu0 %v582
    %v793 = vpop.f32.mrb[0].mxu0
    %v794 = vadd.f32 %v615, %v793
    %v795 = vpop.f32.mrb[0].mxu0
    %796 = vmatprep.mubr.f32.mxu0 0.0
    %797 = vmatmul.mubr.f32.gmra.mrb[0].mxu0 %v583
    %v798 = vpop.f32.mrb[0].mxu0
    %v799 = vadd.f32 %v615, %v798
    %v800 = vpop.f32.mrb[0].mxu0
    %801 = vmatprep.mubr.f32.mxu0 0.0
    %802 = vmatmul.mubr.f32.gmra.mrb[0].mxu0 %v584
    %v803 = vpop.f32.mrb[0].mxu0
    %v804 = vadd.f32 %v615, %v803
    %v805 = vpop.f32.mrb[0].mxu0
    %806 = vmatprep.mubr.f32.mxu0 0.0
    %807 = vmatmul.mubr.f32.gmra.mrb[0].mxu0 %v585
    %v808 = vpop.f32.mrb[0].mxu0
    %v809 = vadd.f32 %v615, %v808
    %v810 = vpop.f32.mrb[0].mxu0
    %811 = vmatprep.mubr.f32.mxu0 0.0
    %812 = vmatmul.mubr.f32.gmra.mrb[0].mxu0 %v586
    %v813 = vpop.f32.mrb[0].mxu0
    %v814 = vadd.f32 %v615, %v813
    %v815 = vpop.f32.mrb[0].mxu0
    %816 = vmatprep.mubr.f32.mxu0 0.0
    %817 = vmatmul.mubr.f32.gmra.mrb[0].mxu0 %v587
    %v818 = vpop.f32.mrb[0].mxu0
    %v819 = vadd.f32 %v615, %v818
    %v820 = vpop.f32.mrb[0].mxu0
    %821 = vmatprep.mubr.f32.mxu0 0.0
    %822 = vmatmul.mubr.f32.gmra.mrb[0].mxu0 %v588
    %v823 = vpop.f32.mrb[0].mxu0
    %v824 = vadd.f32 %v615, %v823
    %v825 = vpop.f32.mrb[0].mxu0
    %826 = vmatprep.mubr.f32.mxu0 0.0
    %827 = vmatmul.mubr.f32.gmra.mrb[0].mxu0 %v589
    %v828 = vpop.f32.mrb[0].mxu0
    %v829 = vadd.f32 %v615, %v828
    %v830 = vpop.f32.mrb[0].mxu0
    %831 = vmatprep.mubr.f32.mxu0 0.0
    %832 = vmatmul.mubr.f32.gmra.mrb[0].mxu0 %v590
    %v833 = vpop.f32.mrb[0].mxu0
    %v834 = vadd.f32 %v615, %v833
    %v835 = vpop.f32.mrb[0].mxu0
    %836 = vmatprep.mubr.f32.mxu0 0.0
    %837 = vmatmul.mubr.f32.gmra.mrb[0].mxu0 %v591
    %v838 = vpop.f32.mrb[0].mxu0
    %v839 = vadd.f32 %v615, %v838
    %v840 = vpop.f32.mrb[0].mxu0
    %841 = vdwg.mxu0
    %v842 = vtanh.pop %v684
    %v843 = vtanh.pop %v689
    %v844 = vtanh.pop %v694
    %v845 = vtanh.pop %v699
    %v846 = vtanh.pop %v704
    %v847 = vtanh.pop %v709
    %v848 = vtanh.pop %v714
    %v849 = vtanh.pop %v719
    %v850 = vtanh.pop %v724
    %v851 = vtanh.pop %v729
    %v852 = vtanh.pop %v734
    %v853 = vtanh.pop %v739
    %v854 = vtanh.pop %v744
    %v855 = vtanh.pop %v749
    %v856 = vtanh.pop %v754
    %v857 = vtanh.pop %v759
    %v858 = vtanh.pop %v764
    %v859 = vtanh.pop %v769
    %v860 = vtanh.pop %v774
    %v861 = vtanh.pop %v779
    %v862 = vtanh.pop %v784
    %v863 = vtanh.pop %v789
    %v864 = vtanh.pop %v794
    %v865 = vtanh.pop %v799
    %v866 = vtanh.pop %v804
    %v867 = vtanh.pop %v809
    %v868 = vtanh.pop %v814
    %v869 = vtanh.pop %v819
    %v870 = vtanh.pop %v824
    %v871 = vtanh.pop %v829
    %v872 = vtanh.pop %v834
    %v873 = vtanh.pop %v839
    %s874 = scalar_lea.vmem [#allocation2], 256
    %v875 = vld [vmem:[%s874] sm:$0xff]
    %v876 = vld [vmem:[%s874 + $0x8] sm:$0xff]
    %v877 = vld [vmem:[%s874 + $0x10] sm:$0xff]
    %v878 = vld [vmem:[%s874 + $0x18] sm:$0xff]
    %v879 = vld [vmem:[%s874 + $0x20] sm:$0xff]
    %v880 = vld [vmem:[%s874 + $0x28] sm:$0xff]
    %v881 = vld [vmem:[%s874 + $0x30] sm:$0xff]
    %v882 = vld [vmem:[%s874 + $0x38] sm:$0xff]
    %v883 = vld [vmem:[%s874 + $0x40] sm:$0xff]
    %v884 = vld [vmem:[%s874 + $0x48] sm:$0xff]
    %v885 = vld [vmem:[%s874 + $0x50] sm:$0xff]
    %v886 = vld [vmem:[%s874 + $0x58] sm:$0xff]
    %v887 = vld [vmem:[%s874 + $0x60] sm:$0xff]
    %v888 = vld [vmem:[%s874 + $0x68] sm:$0xff]
    %v889 = vld [vmem:[%s874 + $0x70] sm:$0xff]
    %v890 = vld [vmem:[%s874 + $0x78] sm:$0xff]
    %s891 = scalar_lea.vmem %s3, 2
    %v892 = vld [vmem:[%s891] sm:$0x1]
    %v894 = vlaneseq
    %v895 = vshrl.u32 %v894, 7
    %v896 = vsub.s32 0, %v895
    %v897 = vrot.slane %v892, %v896
    %899 = vmatprep.subr.mxu0 0.0
    %900 = vmatpush1.msra.mxu0 %v875
    %901 = vmatprep.subr.mxu0 0.0
    %902 = vmatpush1.msra.mxu0 %v876
    %903 = vmatprep.subr.mxu0 0.0
    %904 = vmatpush1.msra.mxu0 %v877
    %905 = vmatprep.subr.mxu0 0.0
    %906 = vmatpush1.msra.mxu0 %v878
    %907 = vmatprep.subr.mxu0 0.0
    %908 = vmatpush1.msra.mxu0 %v879
    %909 = vmatprep.subr.mxu0 0.0
    %910 = vmatpush1.msra.mxu0 %v880
    %911 = vmatprep.subr.mxu0 0.0
    %912 = vmatpush1.msra.mxu0 %v881
    %913 = vmatprep.subr.mxu0 0.0
    %914 = vmatpush1.msra.mxu0 %v882
    %915 = vmatprep.subr.mxu0 0.0
    %916 = vmatpush1.msra.mxu0 %v883
    %917 = vmatprep.subr.mxu0 0.0
    %918 = vmatpush1.msra.mxu0 %v884
    %919 = vmatprep.subr.mxu0 0.0
    %920 = vmatpush1.msra.mxu0 %v885
    %921 = vmatprep.subr.mxu0 0.0
    %922 = vmatpush1.msra.mxu0 %v886
    %923 = vmatprep.subr.mxu0 0.0
    %924 = vmatpush1.msra.mxu0 %v887
    %925 = vmatprep.subr.mxu0 0.0
    %926 = vmatpush1.msra.mxu0 %v888
    %927 = vmatprep.subr.mxu0 0.0
    %928 = vmatpush1.msra.mxu0 %v889
    %929 = vmatprep.subr.mxu0 0.0
    %930 = vmatpush1.msra.mxu0 %v890
    %931 = vmatprep.subr.mxu0 0.0
    %932 = vmatpush1.msra.mxu0 0.0
    %933 = vmatprep.subr.mxu0 0.0
    %934 = vmatpush1.msra.mxu0 0.0
    %935 = vmatprep.subr.mxu0 0.0
    %936 = vmatpush1.msra.mxu0 0.0
    %937 = vmatprep.subr.mxu0 0.0
    %938 = vmatpush1.msra.mxu0 0.0
    %939 = vmatprep.subr.mxu0 0.0
    %940 = vmatpush1.msra.mxu0 0.0
    %941 = vmatprep.subr.mxu0 0.0
    %942 = vmatpush1.msra.mxu0 0.0
    %943 = vmatprep.subr.mxu0 0.0
    %944 = vmatpush1.msra.mxu0 0.0
    %945 = vmatprep.subr.mxu0 0.0
    %946 = vmatpush1.msra.mxu0 0.0
    %947 = vmatprep.subr.mxu0 0.0
    %948 = vmatpush1.msra.mxu0 0.0
    %949 = vmatprep.subr.mxu0 0.0
    %950 = vmatpush1.msra.mxu0 0.0
    %951 = vmatprep.subr.mxu0 0.0
    %952 = vmatpush1.msra.mxu0 0.0
    %953 = vmatprep.subr.mxu0 0.0
    %954 = vmatpush1.msra.mxu0 0.0
    %955 = vmatprep.subr.mxu0 0.0
    %956 = vmatpush1.msra.mxu0 0.0
    %957 = vmatprep.subr.mxu0 0.0
    %958 = vmatpush1.msra.mxu0 0.0
    %959 = vmatprep.subr.mxu0 0.0
    %960 = vmatpush1.msra.mxu0 0.0
    %961 = vmatprep.subr.mxu0 0.0
    %962 = vmatpush1.msra.mxu0 0.0
    %963 = vmatprep.mubr.f32.mxu0 0.0
    %964 = vmatmul.mubr.f32.gmra.mrb[0].mxu0 %v842
    %v965 = vpop.f32.mrb[0].mxu0
    %v966 = vadd.f32 %v897, %v965
    %v967 = vpop.f32.mrb[0].mxu0
    %968 = vmatprep.mubr.f32.mxu0 0.0
    %969 = vmatmul.mubr.f32.gmra.mrb[0].mxu0 %v843
    %v970 = vpop.f32.mrb[0].mxu0
    %v971 = vadd.f32 %v897, %v970
    %v972 = vpop.f32.mrb[0].mxu0
    %973 = vmatprep.mubr.f32.mxu0 0.0
    %974 = vmatmul.mubr.f32.gmra.mrb[0].mxu0 %v844
    %v975 = vpop.f32.mrb[0].mxu0
    %v976 = vadd.f32 %v897, %v975
    %v977 = vpop.f32.mrb[0].mxu0
    %978 = vmatprep.mubr.f32.mxu0 0.0
    %979 = vmatmul.mubr.f32.gmra.mrb[0].mxu0 %v845
    %v980 = vpop.f32.mrb[0].mxu0
    %v981 = vadd.f32 %v897, %v980
    %v982 = vpop.f32.mrb[0].mxu0
    %983 = vmatprep.mubr.f32.mxu0 0.0
    %984 = vmatmul.mubr.f32.gmra.mrb[0].mxu0 %v846
    %v985 = vpop.f32.mrb[0].mxu0
    %v986 = vadd.f32 %v897, %v985
    %v987 = vpop.f32.mrb[0].mxu0
    %988 = vmatprep.mubr.f32.mxu0 0.0
    %989 = vmatmul.mubr.f32.gmra.mrb[0].mxu0 %v847
    %v990 = vpop.f32.mrb[0].mxu0
    %v991 = vadd.f32 %v897, %v990
    %v992 = vpop.f32.mrb[0].mxu0
    %993 = vmatprep.mubr.f32.mxu0 0.0
    %994 = vmatmul.mubr.f32.gmra.mrb[0].mxu0 %v848
    %v995 = vpop.f32.mrb[0].mxu0
    %v996 = vadd.f32 %v897, %v995
    %v997 = vpop.f32.mrb[0].mxu0
    %998 = vmatprep.mubr.f32.mxu0 0.0
    %999 = vmatmul.mubr.f32.gmra.mrb[0].mxu0 %v849
    %v1000 = vpop.f32.mrb[0].mxu0
    %v1001 = vadd.f32 %v897, %v1000
    %v1002 = vpop.f32.mrb[0].mxu0
    %1003 = vmatprep.mubr.f32.mxu0 0.0
    %1004 = vmatmul.mubr.f32.gmra.mrb[0].mxu0 %v850
    %v1005 = vpop.f32.mrb[0].mxu0
    %v1006 = vadd.f32 %v897, %v1005
    %v1007 = vpop.f32.mrb[0].mxu0
    %1008 = vmatprep.mubr.f32.mxu0 0.0
    %1009 = vmatmul.mubr.f32.gmra.mrb[0].mxu0 %v851
    %v1010 = vpop.f32.mrb[0].mxu0
    %v1011 = vadd.f32 %v897, %v1010
    %v1012 = vpop.f32.mrb[0].mxu0
    %1013 = vmatprep.mubr.f32.mxu0 0.0
    %1014 = vmatmul.mubr.f32.gmra.mrb[0].mxu0 %v852
    %v1015 = vpop.f32.mrb[0].mxu0
    %v1016 = vadd.f32 %v897, %v1015
    %v1017 = vpop.f32.mrb[0].mxu0
    %1018 = vmatprep.mubr.f32.mxu0 0.0
    %1019 = vmatmul.mubr.f32.gmra.mrb[0].mxu0 %v853
    %v1020 = vpop.f32.mrb[0].mxu0
    %v1021 = vadd.f32 %v897, %v1020
    %v1022 = vpop.f32.mrb[0].mxu0
    %1023 = vmatprep.mubr.f32.mxu0 0.0
    %1024 = vmatmul.mubr.f32.gmra.mrb[0].mxu0 %v854
    %v1025 = vpop.f32.mrb[0].mxu0
    %v1026 = vadd.f32 %v897, %v1025
    %v1027 = vpop.f32.mrb[0].mxu0
    %1028 = vmatprep.mubr.f32.mxu0 0.0
    %1029 = vmatmul.mubr.f32.gmra.mrb[0].mxu0 %v855
    %v1030 = vpop.f32.mrb[0].mxu0
    %v1031 = vadd.f32 %v897, %v1030
    %v1032 = vpop.f32.mrb[0].mxu0
    %1033 = vmatprep.mubr.f32.mxu0 0.0
    %1034 = vmatmul.mubr.f32.gmra.mrb[0].mxu0 %v856
    %v1035 = vpop.f32.mrb[0].mxu0
    %v1036 = vadd.f32 %v897, %v1035
    %v1037 = vpop.f32.mrb[0].mxu0
    %1038 = vmatprep.mubr.f32.mxu0 0.0
    %1039 = vmatmul.mubr.f32.gmra.mrb[0].mxu0 %v857
    %v1040 = vpop.f32.mrb[0].mxu0
    %v1041 = vadd.f32 %v897, %v1040
    %v1042 = vpop.f32.mrb[0].mxu0
    %1043 = vmatprep.mubr.f32.mxu0 0.0
    %1044 = vmatmul.mubr.f32.gmra.mrb[0].mxu0 %v858
    %v1045 = vpop.f32.mrb[0].mxu0
    %v1046 = vadd.f32 %v897, %v1045
    %v1047 = vpop.f32.mrb[0].mxu0
    %1048 = vmatprep.mubr.f32.mxu0 0.0
    %1049 = vmatmul.mubr.f32.gmra.mrb[0].mxu0 %v859
    %v1050 = vpop.f32.mrb[0].mxu0
    %v1051 = vadd.f32 %v897, %v1050
    %v1052 = vpop.f32.mrb[0].mxu0
    %1053 = vmatprep.mubr.f32.mxu0 0.0
    %1054 = vmatmul.mubr.f32.gmra.mrb[0].mxu0 %v860
    %v1055 = vpop.f32.mrb[0].mxu0
    %v1056 = vadd.f32 %v897, %v1055
    %v1057 = vpop.f32.mrb[0].mxu0
    %1058 = vmatprep.mubr.f32.mxu0 0.0
    %1059 = vmatmul.mubr.f32.gmra.mrb[0].mxu0 %v861
    %v1060 = vpop.f32.mrb[0].mxu0
    %v1061 = vadd.f32 %v897, %v1060
    %v1062 = vpop.f32.mrb[0].mxu0
    %1063 = vmatprep.mubr.f32.mxu0 0.0
    %1064 = vmatmul.mubr.f32.gmra.mrb[0].mxu0 %v862
    %v1065 = vpop.f32.mrb[0].mxu0
    %v1066 = vadd.f32 %v897, %v1065
    %v1067 = vpop.f32.mrb[0].mxu0
    %1068 = vmatprep.mubr.f32.mxu0 0.0
    %1069 = vmatmul.mubr.f32.gmra.mrb[0].mxu0 %v863
    %v1070 = vpop.f32.mrb[0].mxu0
    %v1071 = vadd.f32 %v897, %v1070
    %v1072 = vpop.f32.mrb[0].mxu0
    %1073 = vmatprep.mubr.f32.mxu0 0.0
    %1074 = vmatmul.mubr.f32.gmra.mrb[0].mxu0 %v864
    %v1075 = vpop.f32.mrb[0].mxu0
    %v1076 = vadd.f32 %v897, %v1075
    %v1077 = vpop.f32.mrb[0].mxu0
    %1078 = vmatprep.mubr.f32.mxu0 0.0
    %1079 = vmatmul.mubr.f32.gmra.mrb[0].mxu0 %v865
    %v1080 = vpop.f32.mrb[0].mxu0
    %v1081 = vadd.f32 %v897, %v1080
    %v1082 = vpop.f32.mrb[0].mxu0
    %1083 = vmatprep.mubr.f32.mxu0 0.0
    %1084 = vmatmul.mubr.f32.gmra.mrb[0].mxu0 %v866
    %v1085 = vpop.f32.mrb[0].mxu0
    %v1086 = vadd.f32 %v897, %v1085
    %v1087 = vpop.f32.mrb[0].mxu0
    %1088 = vmatprep.mubr.f32.mxu0 0.0
    %1089 = vmatmul.mubr.f32.gmra.mrb[0].mxu0 %v867
    %v1090 = vpop.f32.mrb[0].mxu0
    %v1091 = vadd.f32 %v897, %v1090
    %v1092 = vpop.f32.mrb[0].mxu0
    %1093 = vmatprep.mubr.f32.mxu0 0.0
    %1094 = vmatmul.mubr.f32.gmra.mrb[0].mxu0 %v868
    %v1095 = vpop.f32.mrb[0].mxu0
    %v1096 = vadd.f32 %v897, %v1095
    %v1097 = vpop.f32.mrb[0].mxu0
    %1098 = vmatprep.mubr.f32.mxu0 0.0
    %1099 = vmatmul.mubr.f32.gmra.mrb[0].mxu0 %v869
    %v1100 = vpop.f32.mrb[0].mxu0
    %v1101 = vadd.f32 %v897, %v1100
    %v1102 = vpop.f32.mrb[0].mxu0
    %1103 = vmatprep.mubr.f32.mxu0 0.0
    %1104 = vmatmul.mubr.f32.gmra.mrb[0].mxu0 %v870
    %v1105 = vpop.f32.mrb[0].mxu0
    %v1106 = vadd.f32 %v897, %v1105
    %v1107 = vpop.f32.mrb[0].mxu0
    %1108 = vmatprep.mubr.f32.mxu0 0.0
    %1109 = vmatmul.mubr.f32.gmra.mrb[0].mxu0 %v871
    %v1110 = vpop.f32.mrb[0].mxu0
    %v1111 = vadd.f32 %v897, %v1110
    %v1112 = vpop.f32.mrb[0].mxu0
    %1113 = vmatprep.mubr.f32.mxu0 0.0
    %1114 = vmatmul.mubr.f32.gmra.mrb[0].mxu0 %v872
    %v1115 = vpop.f32.mrb[0].mxu0
    %v1116 = vadd.f32 %v897, %v1115
    %v1117 = vpop.f32.mrb[0].mxu0
    %1118 = vmatprep.mubr.f32.mxu0 0.0
    %1119 = vmatmul.mubr.f32.gmra.mrb[0].mxu0 %v873
    %v1120 = vpop.f32.mrb[0].mxu0
    %v1121 = vadd.f32 %v897, %v1120
    %v1122 = vpop.f32.mrb[0].mxu0
    %1123 = vdwg.mxu0
    %v1124 = vtanh.pop %v966
    %v1125 = vtanh.pop %v971
    %v1126 = vtanh.pop %v976
    %v1127 = vtanh.pop %v981
    %v1128 = vtanh.pop %v986
    %v1129 = vtanh.pop %v991
    %v1130 = vtanh.pop %v996
    %v1131 = vtanh.pop %v1001
    %v1132 = vtanh.pop %v1006
    %v1133 = vtanh.pop %v1011
    %v1134 = vtanh.pop %v1016
    %v1135 = vtanh.pop %v1021
    %v1136 = vtanh.pop %v1026
    %v1137 = vtanh.pop %v1031
    %v1138 = vtanh.pop %v1036
    %v1139 = vtanh.pop %v1041
    %v1140 = vtanh.pop %v1046
    %v1141 = vtanh.pop %v1051
    %v1142 = vtanh.pop %v1056
    %v1143 = vtanh.pop %v1061
    %v1144 = vtanh.pop %v1066
    %v1145 = vtanh.pop %v1071
    %v1146 = vtanh.pop %v1076
    %v1147 = vtanh.pop %v1081
    %v1148 = vtanh.pop %v1086
    %v1149 = vtanh.pop %v1091
    %v1150 = vtanh.pop %v1096
    %v1151 = vtanh.pop %v1101
    %v1152 = vtanh.pop %v1106
    %v1153 = vtanh.pop %v1111
    %v1154 = vtanh.pop %v1116
    %v1155 = vtanh.pop %v1121
    %s1156 = scalar_lea.vmem [#allocation2], 384
    %v1157 = vld [vmem:[%s1156] sm:$0xff]
    %v1158 = vld [vmem:[%s1156 + $0x8] sm:$0xff]
    %v1159 = vld [vmem:[%s1156 + $0x10] sm:$0xff]
    %v1160 = vld [vmem:[%s1156 + $0x18] sm:$0xff]
    %v1161 = vld [vmem:[%s1156 + $0x20] sm:$0xff]
    %v1162 = vld [vmem:[%s1156 + $0x28] sm:$0xff]
    %v1163 = vld [vmem:[%s1156 + $0x30] sm:$0xff]
    %v1164 = vld [vmem:[%s1156 + $0x38] sm:$0xff]
    %v1165 = vld [vmem:[%s1156 + $0x40] sm:$0xff]
    %v1166 = vld [vmem:[%s1156 + $0x48] sm:$0xff]
    %v1167 = vld [vmem:[%s1156 + $0x50] sm:$0xff]
    %v1168 = vld [vmem:[%s1156 + $0x58] sm:$0xff]
    %v1169 = vld [vmem:[%s1156 + $0x60] sm:$0xff]
    %v1170 = vld [vmem:[%s1156 + $0x68] sm:$0xff]
    %v1171 = vld [vmem:[%s1156 + $0x70] sm:$0xff]
    %v1172 = vld [vmem:[%s1156 + $0x78] sm:$0xff]
    %s1173 = scalar_lea.vmem %s3, 3
    %v1174 = vld [vmem:[%s1173] sm:$0x1]
    %v1176 = vlaneseq
    %v1177 = vshrl.u32 %v1176, 7
    %v1178 = vsub.s32 0, %v1177
    %v1179 = vrot.slane %v1174, %v1178
    %1181 = vmatprep.subr.mxu0 0.0
    %1182 = vmatpush1.msra.mxu0 %v1157
    %1183 = vmatprep.subr.mxu0 0.0
    %1184 = vmatpush1.msra.mxu0 %v1158
    %1185 = vmatprep.subr.mxu0 0.0
    %1186 = vmatpush1.msra.mxu0 %v1159
    %1187 = vmatprep.subr.mxu0 0.0
    %1188 = vmatpush1.msra.mxu0 %v1160
    %1189 = vmatprep.subr.mxu0 0.0
    %1190 = vmatpush1.msra.mxu0 %v1161
    %1191 = vmatprep.subr.mxu0 0.0
    %1192 = vmatpush1.msra.mxu0 %v1162
    %1193 = vmatprep.subr.mxu0 0.0
    %1194 = vmatpush1.msra.mxu0 %v1163
    %1195 = vmatprep.subr.mxu0 0.0
    %1196 = vmatpush1.msra.mxu0 %v1164
    %1197 = vmatprep.subr.mxu0 0.0
    %1198 = vmatpush1.msra.mxu0 %v1165
    %1199 = vmatprep.subr.mxu0 0.0
    %1200 = vmatpush1.msra.mxu0 %v1166
    %1201 = vmatprep.subr.mxu0 0.0
    %1202 = vmatpush1.msra.mxu0 %v1167
    %1203 = vmatprep.subr.mxu0 0.0
    %1204 = vmatpush1.msra.mxu0 %v1168
    %1205 = vmatprep.subr.mxu0 0.0
    %1206 = vmatpush1.msra.mxu0 %v1169
    %1207 = vmatprep.subr.mxu0 0.0
    %1208 = vmatpush1.msra.mxu0 %v1170
    %1209 = vmatprep.subr.mxu0 0.0
    %1210 = vmatpush1.msra.mxu0 %v1171
    %1211 = vmatprep.subr.mxu0 0.0
    %1212 = vmatpush1.msra.mxu0 %v1172
    %1213 = vmatprep.subr.mxu0 0.0
    %1214 = vmatpush1.msra.mxu0 0.0
    %1215 = vmatprep.subr.mxu0 0.0
    %1216 = vmatpush1.msra.mxu0 0.0
    %1217 = vmatprep.subr.mxu0 0.0
    %1218 = vmatpush1.msra.mxu0 0.0
    %1219 = vmatprep.subr.mxu0 0.0
    %1220 = vmatpush1.msra.mxu0 0.0
    %1221 = vmatprep.subr.mxu0 0.0
    %1222 = vmatpush1.msra.mxu0 0.0
    %1223 = vmatprep.subr.mxu0 0.0
    %1224 = vmatpush1.msra.mxu0 0.0
    %1225 = vmatprep.subr.mxu0 0.0
    %1226 = vmatpush1.msra.mxu0 0.0
    %1227 = vmatprep.subr.mxu0 0.0
    %1228 = vmatpush1.msra.mxu0 0.0
    %1229 = vmatprep.subr.mxu0 0.0
    %1230 = vmatpush1.msra.mxu0 0.0
    %1231 = vmatprep.subr.mxu0 0.0
    %1232 = vmatpush1.msra.mxu0 0.0
    %1233 = vmatprep.subr.mxu0 0.0
    %1234 = vmatpush1.msra.mxu0 0.0
    %1235 = vmatprep.subr.mxu0 0.0
    %1236 = vmatpush1.msra.mxu0 0.0
    %1237 = vmatprep.subr.mxu0 0.0
    %1238 = vmatpush1.msra.mxu0 0.0
    %1239 = vmatprep.subr.mxu0 0.0
    %1240 = vmatpush1.msra.mxu0 0.0
    %1241 = vmatprep.subr.mxu0 0.0
    %1242 = vmatpush1.msra.mxu0 0.0
    %1243 = vmatprep.subr.mxu0 0.0
    %1244 = vmatpush1.msra.mxu0 0.0
    %1245 = vmatprep.mubr.f32.mxu0 0.0
    %1246 = vmatmul.mubr.f32.gmra.mrb[0].mxu0 %v1124
    %v1247 = vpop.f32.mrb[0].mxu0
    %v1248 = vadd.f32 %v1179, %v1247
    %v1249 = vpop.f32.mrb[0].mxu0
    %1250 = vmatprep.mubr.f32.mxu0 0.0
    %1251 = vmatmul.mubr.f32.gmra.mrb[0].mxu0 %v1125
    %v1252 = vpop.f32.mrb[0].mxu0
    %v1253 = vadd.f32 %v1179, %v1252
    %v1254 = vpop.f32.mrb[0].mxu0
    %1255 = vmatprep.mubr.f32.mxu0 0.0
    %1256 = vmatmul.mubr.f32.gmra.mrb[0].mxu0 %v1126
    %v1257 = vpop.f32.mrb[0].mxu0
    %v1258 = vadd.f32 %v1179, %v1257
    %v1259 = vpop.f32.mrb[0].mxu0
    %1260 = vmatprep.mubr.f32.mxu0 0.0
    %1261 = vmatmul.mubr.f32.gmra.mrb[0].mxu0 %v1127
    %v1262 = vpop.f32.mrb[0].mxu0
    %v1263 = vadd.f32 %v1179, %v1262
    %v1264 = vpop.f32.mrb[0].mxu0
    %1265 = vmatprep.mubr.f32.mxu0 0.0
    %1266 = vmatmul.mubr.f32.gmra.mrb[0].mxu0 %v1128
    %v1267 = vpop.f32.mrb[0].mxu0
    %v1268 = vadd.f32 %v1179, %v1267
    %v1269 = vpop.f32.mrb[0].mxu0
    %1270 = vmatprep.mubr.f32.mxu0 0.0
    %1271 = vmatmul.mubr.f32.gmra.mrb[0].mxu0 %v1129
    %v1272 = vpop.f32.mrb[0].mxu0
    %v1273 = vadd.f32 %v1179, %v1272
    %v1274 = vpop.f32.mrb[0].mxu0
    %1275 = vmatprep.mubr.f32.mxu0 0.0
    %1276 = vmatmul.mubr.f32.gmra.mrb[0].mxu0 %v1130
    %v1277 = vpop.f32.mrb[0].mxu0
    %v1278 = vadd.f32 %v1179, %v1277
    %v1279 = vpop.f32.mrb[0].mxu0
    %1280 = vmatprep.mubr.f32.mxu0 0.0
    %1281 = vmatmul.mubr.f32.gmra.mrb[0].mxu0 %v1131
    %v1282 = vpop.f32.mrb[0].mxu0
    %v1283 = vadd.f32 %v1179, %v1282
    %v1284 = vpop.f32.mrb[0].mxu0
    %1285 = vmatprep.mubr.f32.mxu0 0.0
    %1286 = vmatmul.mubr.f32.gmra.mrb[0].mxu0 %v1132
    %v1287 = vpop.f32.mrb[0].mxu0
    %v1288 = vadd.f32 %v1179, %v1287
    %v1289 = vpop.f32.mrb[0].mxu0
    %1290 = vmatprep.mubr.f32.mxu0 0.0
    %1291 = vmatmul.mubr.f32.gmra.mrb[0].mxu0 %v1133
    %v1292 = vpop.f32.mrb[0].mxu0
    %v1293 = vadd.f32 %v1179, %v1292
    %v1294 = vpop.f32.mrb[0].mxu0
    %1295 = vmatprep.mubr.f32.mxu0 0.0
    %1296 = vmatmul.mubr.f32.gmra.mrb[0].mxu0 %v1134
    %v1297 = vpop.f32.mrb[0].mxu0
    %v1298 = vadd.f32 %v1179, %v1297
    %v1299 = vpop.f32.mrb[0].mxu0
    %1300 = vmatprep.mubr.f32.mxu0 0.0
    %1301 = vmatmul.mubr.f32.gmra.mrb[0].mxu0 %v1135
    %v1302 = vpop.f32.mrb[0].mxu0
    %v1303 = vadd.f32 %v1179, %v1302
    %v1304 = vpop.f32.mrb[0].mxu0
    %1305 = vmatprep.mubr.f32.mxu0 0.0
    %1306 = vmatmul.mubr.f32.gmra.mrb[0].mxu0 %v1136
    %v1307 = vpop.f32.mrb[0].mxu0
    %v1308 = vadd.f32 %v1179, %v1307
    %v1309 = vpop.f32.mrb[0].mxu0
    %1310 = vmatprep.mubr.f32.mxu0 0.0
    %1311 = vmatmul.mubr.f32.gmra.mrb[0].mxu0 %v1137
    %v1312 = vpop.f32.mrb[0].mxu0
    %v1313 = vadd.f32 %v1179, %v1312
    %v1314 = vpop.f32.mrb[0].mxu0
    %1315 = vmatprep.mubr.f32.mxu0 0.0
    %1316 = vmatmul.mubr.f32.gmra.mrb[0].mxu0 %v1138
    %v1317 = vpop.f32.mrb[0].mxu0
    %v1318 = vadd.f32 %v1179, %v1317
    %v1319 = vpop.f32.mrb[0].mxu0
    %1320 = vmatprep.mubr.f32.mxu0 0.0
    %1321 = vmatmul.mubr.f32.gmra.mrb[0].mxu0 %v1139
    %v1322 = vpop.f32.mrb[0].mxu0
    %v1323 = vadd.f32 %v1179, %v1322
    %v1324 = vpop.f32.mrb[0].mxu0
    %1325 = vmatprep.mubr.f32.mxu0 0.0
    %1326 = vmatmul.mubr.f32.gmra.mrb[0].mxu0 %v1140
    %v1327 = vpop.f32.mrb[0].mxu0
    %v1328 = vadd.f32 %v1179, %v1327
    %v1329 = vpop.f32.mrb[0].mxu0
    %1330 = vmatprep.mubr.f32.mxu0 0.0
    %1331 = vmatmul.mubr.f32.gmra.mrb[0].mxu0 %v1141
    %v1332 = vpop.f32.mrb[0].mxu0
    %v1333 = vadd.f32 %v1179, %v1332
    %v1334 = vpop.f32.mrb[0].mxu0
    %1335 = vmatprep.mubr.f32.mxu0 0.0
    %1336 = vmatmul.mubr.f32.gmra.mrb[0].mxu0 %v1142
    %v1337 = vpop.f32.mrb[0].mxu0
    %v1338 = vadd.f32 %v1179, %v1337
    %v1339 = vpop.f32.mrb[0].mxu0
    %1340 = vmatprep.mubr.f32.mxu0 0.0
    %1341 = vmatmul.mubr.f32.gmra.mrb[0].mxu0 %v1143
    %v1342 = vpop.f32.mrb[0].mxu0
    %v1343 = vadd.f32 %v1179, %v1342
    %v1344 = vpop.f32.mrb[0].mxu0
    %1345 = vmatprep.mubr.f32.mxu0 0.0
    %1346 = vmatmul.mubr.f32.gmra.mrb[0].mxu0 %v1144
    %v1347 = vpop.f32.mrb[0].mxu0
    %v1348 = vadd.f32 %v1179, %v1347
    %v1349 = vpop.f32.mrb[0].mxu0
    %1350 = vmatprep.mubr.f32.mxu0 0.0
    %1351 = vmatmul.mubr.f32.gmra.mrb[0].mxu0 %v1145
    %v1352 = vpop.f32.mrb[0].mxu0
    %v1353 = vadd.f32 %v1179, %v1352
    %v1354 = vpop.f32.mrb[0].mxu0
    %1355 = vmatprep.mubr.f32.mxu0 0.0
    %1356 = vmatmul.mubr.f32.gmra.mrb[0].mxu0 %v1146
    %v1357 = vpop.f32.mrb[0].mxu0
    %v1358 = vadd.f32 %v1179, %v1357
    %v1359 = vpop.f32.mrb[0].mxu0
    %1360 = vmatprep.mubr.f32.mxu0 0.0
    %1361 = vmatmul.mubr.f32.gmra.mrb[0].mxu0 %v1147
    %v1362 = vpop.f32.mrb[0].mxu0
    %v1363 = vadd.f32 %v1179, %v1362
    %v1364 = vpop.f32.mrb[0].mxu0
    %1365 = vmatprep.mubr.f32.mxu0 0.0
    %1366 = vmatmul.mubr.f32.gmra.mrb[0].mxu0 %v1148
    %v1367 = vpop.f32.mrb[0].mxu0
    %v1368 = vadd.f32 %v1179, %v1367
    %v1369 = vpop.f32.mrb[0].mxu0
    %1370 = vmatprep.mubr.f32.mxu0 0.0
    %1371 = vmatmul.mubr.f32.gmra.mrb[0].mxu0 %v1149
    %v1372 = vpop.f32.mrb[0].mxu0
    %v1373 = vadd.f32 %v1179, %v1372
    %v1374 = vpop.f32.mrb[0].mxu0
    %1375 = vmatprep.mubr.f32.mxu0 0.0
    %1376 = vmatmul.mubr.f32.gmra.mrb[0].mxu0 %v1150
    %v1377 = vpop.f32.mrb[0].mxu0
    %v1378 = vadd.f32 %v1179, %v1377
    %v1379 = vpop.f32.mrb[0].mxu0
    %1380 = vmatprep.mubr.f32.mxu0 0.0
    %1381 = vmatmul.mubr.f32.gmra.mrb[0].mxu0 %v1151
    %v1382 = vpop.f32.mrb[0].mxu0
    %v1383 = vadd.f32 %v1179, %v1382
    %v1384 = vpop.f32.mrb[0].mxu0
    %1385 = vmatprep.mubr.f32.mxu0 0.0
    %1386 = vmatmul.mubr.f32.gmra.mrb[0].mxu0 %v1152
    %v1387 = vpop.f32.mrb[0].mxu0
    %v1388 = vadd.f32 %v1179, %v1387
    %v1389 = vpop.f32.mrb[0].mxu0
    %1390 = vmatprep.mubr.f32.mxu0 0.0
    %1391 = vmatmul.mubr.f32.gmra.mrb[0].mxu0 %v1153
    %v1392 = vpop.f32.mrb[0].mxu0
    %v1393 = vadd.f32 %v1179, %v1392
    %v1394 = vpop.f32.mrb[0].mxu0
    %1395 = vmatprep.mubr.f32.mxu0 0.0
    %1396 = vmatmul.mubr.f32.gmra.mrb[0].mxu0 %v1154
    %v1397 = vpop.f32.mrb[0].mxu0
    %v1398 = vadd.f32 %v1179, %v1397
    %v1399 = vpop.f32.mrb[0].mxu0
    %1400 = vmatprep.mubr.f32.mxu0 0.0
    %1401 = vmatmul.mubr.f32.gmra.mrb[0].mxu0 %v1155
    %v1402 = vpop.f32.mrb[0].mxu0
    %v1403 = vadd.f32 %v1179, %v1402
    %v1404 = vpop.f32.mrb[0].mxu0
    %1405 = vdwg.mxu0
    %v1406 = vtanh.pop %v1248
    %v1407 = vtanh.pop %v1253
    %v1408 = vtanh.pop %v1258
    %v1409 = vtanh.pop %v1263
    %v1410 = vtanh.pop %v1268
    %v1411 = vtanh.pop %v1273
    %v1412 = vtanh.pop %v1278
    %v1413 = vtanh.pop %v1283
    %v1414 = vtanh.pop %v1288
    %v1415 = vtanh.pop %v1293
    %v1416 = vtanh.pop %v1298
    %v1417 = vtanh.pop %v1303
    %v1418 = vtanh.pop %v1308
    %v1419 = vtanh.pop %v1313
    %v1420 = vtanh.pop %v1318
    %v1421 = vtanh.pop %v1323
    %v1422 = vtanh.pop %v1328
    %v1423 = vtanh.pop %v1333
    %v1424 = vtanh.pop %v1338
    %v1425 = vtanh.pop %v1343
    %v1426 = vtanh.pop %v1348
    %v1427 = vtanh.pop %v1353
    %v1428 = vtanh.pop %v1358
    %v1429 = vtanh.pop %v1363
    %v1430 = vtanh.pop %v1368
    %v1431 = vtanh.pop %v1373
    %v1432 = vtanh.pop %v1378
    %v1433 = vtanh.pop %v1383
    %v1434 = vtanh.pop %v1388
    %v1435 = vtanh.pop %v1393
    %v1436 = vtanh.pop %v1398
    %v1437 = vtanh.pop %v1403
    %s1438 = scalar_lea.vmem [#allocation2], 512
    %v1439 = vld [vmem:[%s1438] sm:$0xff]
    %v1440 = vld [vmem:[%s1438 + $0x8] sm:$0xff]
    %v1441 = vld [vmem:[%s1438 + $0x10] sm:$0xff]
    %v1442 = vld [vmem:[%s1438 + $0x18] sm:$0xff]
    %v1443 = vld [vmem:[%s1438 + $0x20] sm:$0xff]
    %v1444 = vld [vmem:[%s1438 + $0x28] sm:$0xff]
    %v1445 = vld [vmem:[%s1438 + $0x30] sm:$0xff]
    %v1446 = vld [vmem:[%s1438 + $0x38] sm:$0xff]
    %v1447 = vld [vmem:[%s1438 + $0x40] sm:$0xff]
    %v1448 = vld [vmem:[%s1438 + $0x48] sm:$0xff]
    %v1449 = vld [vmem:[%s1438 + $0x50] sm:$0xff]
    %v1450 = vld [vmem:[%s1438 + $0x58] sm:$0xff]
    %v1451 = vld [vmem:[%s1438 + $0x60] sm:$0xff]
    %v1452 = vld [vmem:[%s1438 + $0x68] sm:$0xff]
    %v1453 = vld [vmem:[%s1438 + $0x70] sm:$0xff]
    %v1454 = vld [vmem:[%s1438 + $0x78] sm:$0xff]
    %s1455 = scalar_lea.vmem %s3, 4
    %v1456 = vld [vmem:[%s1455] sm:$0x1]
    %v1458 = vlaneseq
    %v1459 = vshrl.u32 %v1458, 7
    %v1460 = vsub.s32 0, %v1459
    %v1461 = vrot.slane %v1456, %v1460
    %1463 = vmatprep.subr.mxu0 0.0
    %1464 = vmatpush1.msra.mxu0 %v1439
    %1465 = vmatprep.subr.mxu0 0.0
    %1466 = vmatpush1.msra.mxu0 %v1440
    %1467 = vmatprep.subr.mxu0 0.0
    %1468 = vmatpush1.msra.mxu0 %v1441
    %1469 = vmatprep.subr.mxu0 0.0
    %1470 = vmatpush1.msra.mxu0 %v1442
    %1471 = vmatprep.subr.mxu0 0.0
    %1472 = vmatpush1.msra.mxu0 %v1443
    %1473 = vmatprep.subr.mxu0 0.0
    %1474 = vmatpush1.msra.mxu0 %v1444
    %1475 = vmatprep.subr.mxu0 0.0
    %1476 = vmatpush1.msra.mxu0 %v1445
    %1477 = vmatprep.subr.mxu0 0.0
    %1478 = vmatpush1.msra.mxu0 %v1446
    %1479 = vmatprep.subr.mxu0 0.0
    %1480 = vmatpush1.msra.mxu0 %v1447
    %1481 = vmatprep.subr.mxu0 0.0
    %1482 = vmatpush1.msra.mxu0 %v1448
    %1483 = vmatprep.subr.mxu0 0.0
    %1484 = vmatpush1.msra.mxu0 %v1449
    %1485 = vmatprep.subr.mxu0 0.0
    %1486 = vmatpush1.msra.mxu0 %v1450
    %1487 = vmatprep.subr.mxu0 0.0
    %1488 = vmatpush1.msra.mxu0 %v1451
    %1489 = vmatprep.subr.mxu0 0.0
    %1490 = vmatpush1.msra.mxu0 %v1452
    %1491 = vmatprep.subr.mxu0 0.0
    %1492 = vmatpush1.msra.mxu0 %v1453
    %1493 = vmatprep.subr.mxu0 0.0
    %1494 = vmatpush1.msra.mxu0 %v1454
    %1495 = vmatprep.subr.mxu0 0.0
    %1496 = vmatpush1.msra.mxu0 0.0
    %1497 = vmatprep.subr.mxu0 0.0
    %1498 = vmatpush1.msra.mxu0 0.0
    %1499 = vmatprep.subr.mxu0 0.0
    %1500 = vmatpush1.msra.mxu0 0.0
    %1501 = vmatprep.subr.mxu0 0.0
    %1502 = vmatpush1.msra.mxu0 0.0
    %1503 = vmatprep.subr.mxu0 0.0
    %1504 = vmatpush1.msra.mxu0 0.0
    %1505 = vmatprep.subr.mxu0 0.0
    %1506 = vmatpush1.msra.mxu0 0.0
    %1507 = vmatprep.subr.mxu0 0.0
    %1508 = vmatpush1.msra.mxu0 0.0
    %1509 = vmatprep.subr.mxu0 0.0
    %1510 = vmatpush1.msra.mxu0 0.0
    %1511 = vmatprep.subr.mxu0 0.0
    %1512 = vmatpush1.msra.mxu0 0.0
    %1513 = vmatprep.subr.mxu0 0.0
    %1514 = vmatpush1.msra.mxu0 0.0
    %1515 = vmatprep.subr.mxu0 0.0
    %1516 = vmatpush1.msra.mxu0 0.0
    %1517 = vmatprep.subr.mxu0 0.0
    %1518 = vmatpush1.msra.mxu0 0.0
    %1519 = vmatprep.subr.mxu0 0.0
    %1520 = vmatpush1.msra.mxu0 0.0
    %1521 = vmatprep.subr.mxu0 0.0
    %1522 = vmatpush1.msra.mxu0 0.0
    %1523 = vmatprep.subr.mxu0 0.0
    %1524 = vmatpush1.msra.mxu0 0.0
    %1525 = vmatprep.subr.mxu0 0.0
    %1526 = vmatpush1.msra.mxu0 0.0
    %1527 = vmatprep.mubr.f32.mxu0 0.0
    %1528 = vmatmul.mubr.f32.gmra.mrb[0].mxu0 %v1406
    %v1529 = vpop.f32.mrb[0].mxu0
    %v1530 = vadd.f32 %v1461, %v1529
    %v1531 = vpop.f32.mrb[0].mxu0
    %1532 = vmatprep.mubr.f32.mxu0 0.0
    %1533 = vmatmul.mubr.f32.gmra.mrb[0].mxu0 %v1407
    %v1534 = vpop.f32.mrb[0].mxu0
    %v1535 = vadd.f32 %v1461, %v1534
    %v1536 = vpop.f32.mrb[0].mxu0
    %1537 = vmatprep.mubr.f32.mxu0 0.0
    %1538 = vmatmul.mubr.f32.gmra.mrb[0].mxu0 %v1408
    %v1539 = vpop.f32.mrb[0].mxu0
    %v1540 = vadd.f32 %v1461, %v1539
    %v1541 = vpop.f32.mrb[0].mxu0
    %1542 = vmatprep.mubr.f32.mxu0 0.0
    %1543 = vmatmul.mubr.f32.gmra.mrb[0].mxu0 %v1409
    %v1544 = vpop.f32.mrb[0].mxu0
    %v1545 = vadd.f32 %v1461, %v1544
    %v1546 = vpop.f32.mrb[0].mxu0
    %1547 = vmatprep.mubr.f32.mxu0 0.0
    %1548 = vmatmul.mubr.f32.gmra.mrb[0].mxu0 %v1410
    %v1549 = vpop.f32.mrb[0].mxu0
    %v1550 = vadd.f32 %v1461, %v1549
    %v1551 = vpop.f32.mrb[0].mxu0
    %1552 = vmatprep.mubr.f32.mxu0 0.0
    %1553 = vmatmul.mubr.f32.gmra.mrb[0].mxu0 %v1411
    %v1554 = vpop.f32.mrb[0].mxu0
    %v1555 = vadd.f32 %v1461, %v1554
    %v1556 = vpop.f32.mrb[0].mxu0
    %1557 = vmatprep.mubr.f32.mxu0 0.0
    %1558 = vmatmul.mubr.f32.gmra.mrb[0].mxu0 %v1412
    %v1559 = vpop.f32.mrb[0].mxu0
    %v1560 = vadd.f32 %v1461, %v1559
    %v1561 = vpop.f32.mrb[0].mxu0
    %1562 = vmatprep.mubr.f32.mxu0 0.0
    %1563 = vmatmul.mubr.f32.gmra.mrb[0].mxu0 %v1413
    %v1564 = vpop.f32.mrb[0].mxu0
    %v1565 = vadd.f32 %v1461, %v1564
    %v1566 = vpop.f32.mrb[0].mxu0
    %1567 = vmatprep.mubr.f32.mxu0 0.0
    %1568 = vmatmul.mubr.f32.gmra.mrb[0].mxu0 %v1414
    %v1569 = vpop.f32.mrb[0].mxu0
    %v1570 = vadd.f32 %v1461, %v1569
    %v1571 = vpop.f32.mrb[0].mxu0
    %1572 = vmatprep.mubr.f32.mxu0 0.0
    %1573 = vmatmul.mubr.f32.gmra.mrb[0].mxu0 %v1415
    %v1574 = vpop.f32.mrb[0].mxu0
    %v1575 = vadd.f32 %v1461, %v1574
    %v1576 = vpop.f32.mrb[0].mxu0
    %1577 = vmatprep.mubr.f32.mxu0 0.0
    %1578 = vmatmul.mubr.f32.gmra.mrb[0].mxu0 %v1416
    %v1579 = vpop.f32.mrb[0].mxu0
    %v1580 = vadd.f32 %v1461, %v1579
    %v1581 = vpop.f32.mrb[0].mxu0
    %1582 = vmatprep.mubr.f32.mxu0 0.0
    %1583 = vmatmul.mubr.f32.gmra.mrb[0].mxu0 %v1417
    %v1584 = vpop.f32.mrb[0].mxu0
    %v1585 = vadd.f32 %v1461, %v1584
    %v1586 = vpop.f32.mrb[0].mxu0
    %1587 = vmatprep.mubr.f32.mxu0 0.0
    %1588 = vmatmul.mubr.f32.gmra.mrb[0].mxu0 %v1418
    %v1589 = vpop.f32.mrb[0].mxu0
    %v1590 = vadd.f32 %v1461, %v1589
    %v1591 = vpop.f32.mrb[0].mxu0
    %1592 = vmatprep.mubr.f32.mxu0 0.0
    %1593 = vmatmul.mubr.f32.gmra.mrb[0].mxu0 %v1419
    %v1594 = vpop.f32.mrb[0].mxu0
    %v1595 = vadd.f32 %v1461, %v1594
    %v1596 = vpop.f32.mrb[0].mxu0
    %1597 = vmatprep.mubr.f32.mxu0 0.0
    %1598 = vmatmul.mubr.f32.gmra.mrb[0].mxu0 %v1420
    %v1599 = vpop.f32.mrb[0].mxu0
    %v1600 = vadd.f32 %v1461, %v1599
    %v1601 = vpop.f32.mrb[0].mxu0
    %1602 = vmatprep.mubr.f32.mxu0 0.0
    %1603 = vmatmul.mubr.f32.gmra.mrb[0].mxu0 %v1421
    %v1604 = vpop.f32.mrb[0].mxu0
    %v1605 = vadd.f32 %v1461, %v1604
    %v1606 = vpop.f32.mrb[0].mxu0
    %1607 = vmatprep.mubr.f32.mxu0 0.0
    %1608 = vmatmul.mubr.f32.gmra.mrb[0].mxu0 %v1422
    %v1609 = vpop.f32.mrb[0].mxu0
    %v1610 = vadd.f32 %v1461, %v1609
    %v1611 = vpop.f32.mrb[0].mxu0
    %1612 = vmatprep.mubr.f32.mxu0 0.0
    %1613 = vmatmul.mubr.f32.gmra.mrb[0].mxu0 %v1423
    %v1614 = vpop.f32.mrb[0].mxu0
    %v1615 = vadd.f32 %v1461, %v1614
    %v1616 = vpop.f32.mrb[0].mxu0
    %1617 = vmatprep.mubr.f32.mxu0 0.0
    %1618 = vmatmul.mubr.f32.gmra.mrb[0].mxu0 %v1424
    %v1619 = vpop.f32.mrb[0].mxu0
    %v1620 = vadd.f32 %v1461, %v1619
    %v1621 = vpop.f32.mrb[0].mxu0
    %1622 = vmatprep.mubr.f32.mxu0 0.0
    %1623 = vmatmul.mubr.f32.gmra.mrb[0].mxu0 %v1425
    %v1624 = vpop.f32.mrb[0].mxu0
    %v1625 = vadd.f32 %v1461, %v1624
    %v1626 = vpop.f32.mrb[0].mxu0
    %1627 = vmatprep.mubr.f32.mxu0 0.0
    %1628 = vmatmul.mubr.f32.gmra.mrb[0].mxu0 %v1426
    %v1629 = vpop.f32.mrb[0].mxu0
    %v1630 = vadd.f32 %v1461, %v1629
    %v1631 = vpop.f32.mrb[0].mxu0
    %1632 = vmatprep.mubr.f32.mxu0 0.0
    %1633 = vmatmul.mubr.f32.gmra.mrb[0].mxu0 %v1427
    %v1634 = vpop.f32.mrb[0].mxu0
    %v1635 = vadd.f32 %v1461, %v1634
    %v1636 = vpop.f32.mrb[0].mxu0
    %1637 = vmatprep.mubr.f32.mxu0 0.0
    %1638 = vmatmul.mubr.f32.gmra.mrb[0].mxu0 %v1428
    %v1639 = vpop.f32.mrb[0].mxu0
    %v1640 = vadd.f32 %v1461, %v1639
    %v1641 = vpop.f32.mrb[0].mxu0
    %1642 = vmatprep.mubr.f32.mxu0 0.0
    %1643 = vmatmul.mubr.f32.gmra.mrb[0].mxu0 %v1429
    %v1644 = vpop.f32.mrb[0].mxu0
    %v1645 = vadd.f32 %v1461, %v1644
    %v1646 = vpop.f32.mrb[0].mxu0
    %1647 = vmatprep.mubr.f32.mxu0 0.0
    %1648 = vmatmul.mubr.f32.gmra.mrb[0].mxu0 %v1430
    %v1649 = vpop.f32.mrb[0].mxu0
    %v1650 = vadd.f32 %v1461, %v1649
    %v1651 = vpop.f32.mrb[0].mxu0
    %1652 = vmatprep.mubr.f32.mxu0 0.0
    %1653 = vmatmul.mubr.f32.gmra.mrb[0].mxu0 %v1431
    %v1654 = vpop.f32.mrb[0].mxu0
    %v1655 = vadd.f32 %v1461, %v1654
    %v1656 = vpop.f32.mrb[0].mxu0
    %1657 = vmatprep.mubr.f32.mxu0 0.0
    %1658 = vmatmul.mubr.f32.gmra.mrb[0].mxu0 %v1432
    %v1659 = vpop.f32.mrb[0].mxu0
    %v1660 = vadd.f32 %v1461, %v1659
    %v1661 = vpop.f32.mrb[0].mxu0
    %1662 = vmatprep.mubr.f32.mxu0 0.0
    %1663 = vmatmul.mubr.f32.gmra.mrb[0].mxu0 %v1433
    %v1664 = vpop.f32.mrb[0].mxu0
    %v1665 = vadd.f32 %v1461, %v1664
    %v1666 = vpop.f32.mrb[0].mxu0
    %1667 = vmatprep.mubr.f32.mxu0 0.0
    %1668 = vmatmul.mubr.f32.gmra.mrb[0].mxu0 %v1434
    %v1669 = vpop.f32.mrb[0].mxu0
    %v1670 = vadd.f32 %v1461, %v1669
    %v1671 = vpop.f32.mrb[0].mxu0
    %1672 = vmatprep.mubr.f32.mxu0 0.0
    %1673 = vmatmul.mubr.f32.gmra.mrb[0].mxu0 %v1435
    %v1674 = vpop.f32.mrb[0].mxu0
    %v1675 = vadd.f32 %v1461, %v1674
    %v1676 = vpop.f32.mrb[0].mxu0
    %1677 = vmatprep.mubr.f32.mxu0 0.0
    %1678 = vmatmul.mubr.f32.gmra.mrb[0].mxu0 %v1436
    %v1679 = vpop.f32.mrb[0].mxu0
    %v1680 = vadd.f32 %v1461, %v1679
    %v1681 = vpop.f32.mrb[0].mxu0
    %1682 = vmatprep.mubr.f32.mxu0 0.0
    %1683 = vmatmul.mubr.f32.gmra.mrb[0].mxu0 %v1437
    %v1684 = vpop.f32.mrb[0].mxu0
    %v1685 = vadd.f32 %v1461, %v1684
    %v1686 = vpop.f32.mrb[0].mxu0
    %1687 = vdwg.mxu0
    %vm1688 = vcmask 64512
    %1689 = vst.msk [vmem:[%s4] sm:$0xff] %vm1688, %v1530
    %1690 = vst.msk [vmem:[%s4 + $0x8] sm:$0xff] %vm1688, %v1535
    %1691 = vst.msk [vmem:[%s4 + $0x10] sm:$0xff] %vm1688, %v1540
    %1692 = vst.msk [vmem:[%s4 + $0x18] sm:$0xff] %vm1688, %v1545
    %1693 = vst.msk [vmem:[%s4 + $0x20] sm:$0xff] %vm1688, %v1550
    %1694 = vst.msk [vmem:[%s4 + $0x28] sm:$0xff] %vm1688, %v1555
    %1695 = vst.msk [vmem:[%s4 + $0x30] sm:$0xff] %vm1688, %v1560
    %1696 = vst.msk [vmem:[%s4 + $0x38] sm:$0xff] %vm1688, %v1565
    %1697 = vst.msk [vmem:[%s4 + $0x40] sm:$0xff] %vm1688, %v1570
    %1698 = vst.msk [vmem:[%s4 + $0x48] sm:$0xff] %vm1688, %v1575
    %1699 = vst.msk [vmem:[%s4 + $0x50] sm:$0xff] %vm1688, %v1580
    %1700 = vst.msk [vmem:[%s4 + $0x58] sm:$0xff] %vm1688, %v1585
    %1701 = vst.msk [vmem:[%s4 + $0x60] sm:$0xff] %vm1688, %v1590
    %1702 = vst.msk [vmem:[%s4 + $0x68] sm:$0xff] %vm1688, %v1595
    %1703 = vst.msk [vmem:[%s4 + $0x70] sm:$0xff] %vm1688, %v1600
    %1704 = vst.msk [vmem:[%s4 + $0x78] sm:$0xff] %vm1688, %v1605
    %1705 = vst.msk [vmem:[%s4 + $0x80] sm:$0xff] %vm1688, %v1610
    %1706 = vst.msk [vmem:[%s4 + $0x88] sm:$0xff] %vm1688, %v1615
    %1707 = vst.msk [vmem:[%s4 + $0x90] sm:$0xff] %vm1688, %v1620
    %1708 = vst.msk [vmem:[%s4 + $0x98] sm:$0xff] %vm1688, %v1625
    %1709 = vst.msk [vmem:[%s4 + $0xa0] sm:$0xff] %vm1688, %v1630
    %1710 = vst.msk [vmem:[%s4 + $0xa8] sm:$0xff] %vm1688, %v1635
    %1711 = vst.msk [vmem:[%s4 + $0xb0] sm:$0xff] %vm1688, %v1640
    %1712 = vst.msk [vmem:[%s4 + $0xb8] sm:$0xff] %vm1688, %v1645
    %1713 = vst.msk [vmem:[%s4 + $0xc0] sm:$0xff] %vm1688, %v1650
    %1714 = vst.msk [vmem:[%s4 + $0xc8] sm:$0xff] %vm1688, %v1655
    %1715 = vst.msk [vmem:[%s4 + $0xd0] sm:$0xff] %vm1688, %v1660
    %1716 = vst.msk [vmem:[%s4 + $0xd8] sm:$0xff] %vm1688, %v1665
    %1717 = vst.msk [vmem:[%s4 + $0xe0] sm:$0xff] %vm1688, %v1670
    %1718 = vst.msk [vmem:[%s4 + $0xe8] sm:$0xff] %vm1688, %v1675
    %1719 = vst.msk [vmem:[%s4 + $0xf0] sm:$0xff] %vm1688, %v1680
    %1720 = vst.msk [vmem:[%s4 + $0xf8] sm:$0xff] %vm1688, %v1685
    // Predicated region
    $region22: #{tpu_custom_call.1} parent=1 // pred_check
      _
    $region23: #{tpu_custom_call.1} parent=1 // pred_check_branch
      %1722 = sbr.rel (0) target = $region25
    $region24: #{tpu_custom_call.1} parent=1 // pred_region
      _
    $region25: #{tpu_custom_call.1} parent=1 // pred_fallthru
      _
    // Predicated region
    $region26: #{tpu_custom_call.1} parent=1 // pred_check
      _
    $region27: #{tpu_custom_call.1} parent=1 // pred_check_branch
      %1724 = sbr.rel (0) target = $region29
    $region28: #{tpu_custom_call.1} parent=1 // pred_region
      _
    $region29: #{tpu_custom_call.1} parent=1 // pred_fallthru
      _
    %1725 = vsyncpa [#allocation3], 1

</llo_original>
